<compile_context>
chip_gen: v5e
topology: v5e:2x2
jax: 0.10.0
libtpu: 0.0.40
codegen_flags: <defaults>
</compile_context>

<pallas_src>
import math

import jax
import jax.numpy as jnp
from jax.experimental import pallas as pl
from jax.experimental.pallas import tpu as pltpu

PAD = 128            # padded lane width for n(=40), hidden(=100), latent(=5)
N_LAYERS = 9         # encoder(3) + decoder1(3) + decoder2(3)
PREF_TILE_B = 256    # preferred batch tile (multiple of 256 -> full MXU rows on v6e/v7x)
MIN_TILE_B = 16      # bf16 sublane packing => batch tiles are multiples of 16


def _round_up(x, m):
    return ((x + m - 1) // m) * m


def _pick_tile(batch):
    """Adaptive batch tile.

    Big enough to feed the MXU and amortize the ~0.35us grid-step cost,
    small enough that tiny batches (B=1..16) don't pad to 256 rows, and for
    moderate/large batches capped so the grid has >= 2 steps (v7x has two
    TensorCores; dimension_semantics=('parallel',) shards the batch axis).
    """
    b16 = _round_up(batch, MIN_TILE_B)
    tile = min(PREF_TILE_B, b16)
    if b16 > MIN_TILE_B:
        half = _round_up((b16 + 1) // 2, MIN_TILE_B)
        tile = min(tile, max(MIN_TILE_B, half))
    return tile


# ---------------------------------------------------------------------------
# Kernel: full USAD forward for one batch tile.
#   g_ref   : (TILE_B, PAD)      bf16  zero-padded flattened windows
#   w_ref   : (9, PAD, PAD)      bf16  packed weights, layer i = w_ref[i]
#   b_ref   : (9, 1, PAD)        f32   packed biases
#   out_ref : (TILE_B, 3*PAD)    bf16  [ae1 | ae2 | ae2(ae1)] lane-dense
# ---------------------------------------------------------------------------
def usad_kernel(g_ref, w_ref, b_ref, out_ref):
    def linear(x, i):
        # bf16 operands on the MXU, f32 accumulation; bias add / act in f32.
        y = jnp.dot(x.astype(jnp.bfloat16), w_ref[i],
                    preferred_element_type=jnp.float32)
        return y + b_ref[i]

    def encoder(x):
        h = jnp.maximum(linear(x, 0), 0.0)
        h = jnp.maximum(linear(h, 1), 0.0)
        return jnp.maximum(linear(h, 2), 0.0)

    def decoder(x, base):
        h = jnp.maximum(linear(x, base), 0.0)
        h = jnp.maximum(linear(h, base + 1), 0.0)
        return jax.nn.sigmoid(linear(h, base + 2))

    tb = g_ref.shape[0]

    g = g_ref[...]                       # (TILE_B, PAD) bf16
    z = encoder(g)                       # (TILE_B, PAD) f32 (only first 5 lanes live)
    ae1 = decoder(z, 3)                  # decoder1(z)
    z2 = encoder(ae1)                    # encoder(decoder1(z))

    # Fused decoder2: one M = 2*TILE_B pass covers decoder2(z) and
    # decoder2(encoder(ae1)) -> 12 dot calls per tile instead of 15.
    # Sublane-axis concat only (no cross-lane XLU cost).
    zcat = jnp.concatenate([z, z2], axis=0)          # (2*TILE_B, PAD)
    d2 = decoder(zcat, 6)
    ae2 = d2[:tb]
    ae2ae1 = d2[tb:]

    # Three unmasked, 128-lane-aligned static-slice stores (bf16).
    out_ref[:, 0:PAD] = ae1.astype(out_ref.dtype)
    out_ref[:, PAD:2 * PAD] = ae2.astype(out_ref.dtype)
    out_ref[:, 2 * PAD:3 * PAD] = ae2ae1.astype(out_ref.dtype)


# ---------------------------------------------------------------------------
# Parameter construction: PyTorch-Linear-style init, then pack + zero-pad into
# a single bf16 weight slab and a single f32 bias slab.
# Weights are stored as (in, out) (transpose of nn.Linear.weight) so the
# kernel computes x @ W + b.
# ---------------------------------------------------------------------------
def init_usad_params(key, feats, n_window=10, n_hidden=100, n_latent=5):
    n = feats * n_window
    assert n <= PAD and n_hidden <= PAD and n_latent <= PAD, (
        "single-128-lane-tile packing assumes n, n_hidden, n_latent <= 128")
    dims = [
        (n, n_hidden), (n_hidden, n_hidden), (n_hidden, n_latent),   # encoder
        (n_latent, n_hidden), (n_hidden, n_hidden), (n_hidden, n),   # decoder1
        (n_latent, n_hidden), (n_hidden, n_hidden), (n_hidden, n),   # decoder2
    ]
    keys = jax.random.split(key, len(dims))
    ws, bs = [], []
    for k, (fi, fo) in zip(keys, dims):
        kw, kb = jax.random.split(k)
        bound = 1.0 / math.sqrt(fi)
        ws.append(jax.random.uniform(kw, (fi, fo), jnp.float32, -bound, bound))
        bs.append(jax.random.uniform(kb, (fo,), jnp.float32, -bound, bound))

    w_slab = jnp.zeros((N_LAYERS, PAD, PAD), jnp.float32)
    b_slab = jnp.zeros((N_LAYERS, 1, PAD), jnp.float32)
    for i, (w, b) in enumerate(zip(ws, bs)):
        w_slab = w_slab.at[i, : w.shape[0], : w.shape[1]].set(w)
        b_slab = b_slab.at[i, 0, : b.shape[0]].set(b)
    w_slab = w_slab.astype(jnp.bfloat16)
    return (w_slab, b_slab), (ws, bs)


# ---------------------------------------------------------------------------
# Batched wrapper: (B, n_window, n_feats) -> three (B, n) reconstructions.
# ---------------------------------------------------------------------------
@jax.jit
def usad_forward_batched(g_batch, w_slab, b_slab):
    B, n_window, n_feats = g_batch.shape
    n = n_window * n_feats
    assert n <= PAD, "n = n_feats * n_window must be <= 128 for this kernel"

    tile_b = _pick_tile(B)
    grid_b = pl.cdiv(B, tile_b)
    b_pad = grid_b * tile_b

    g_flat = g_batch.reshape(B, n)                         # g.view(B, -1)
    g_p = (jnp.zeros((b_pad, PAD), jnp.bfloat16)
           .at[:B, :n].set(g_flat.astype(jnp.bfloat16)))   # pad + bf16 cast fused

    cost = pl.CostEstimate(
        flops=int(2 * b_pad * 15 * PAD * PAD),             # 15 matvec-equiv / row
        transcendentals=int(3 * b_pad * PAD),               # 3 sigmoid layers / row
        bytes_accessed=int(w_slab.size * 2 + b_slab.size * 4
                           + g_p.size * 2 + b_pad * 3 * PAD * 2),
    )

    out = pl.pallas_call(
        usad_kernel,
        out_shape=jax.ShapeDtypeStruct((b_pad, 3 * PAD), jnp.bfloat16),
        grid_spec=pltpu.PrefetchScalarGridSpec(
            num_scalar_prefetch=0,
            grid=(grid_b,),
            in_specs=[
                pl.BlockSpec((tile_b, PAD), lambda b: (b, 0)),
                pl.BlockSpec((N_LAYERS, PAD, PAD), lambda b: (0, 0, 0)),
                pl.BlockSpec((N_LAYERS, 1, PAD), lambda b: (0, 0, 0)),
            ],
            out_specs=pl.BlockSpec((tile_b, 3 * PAD), lambda b: (b, 0)),
        ),
        compiler_params=pltpu.CompilerParams(
            dimension_semantics=("parallel",)),
        cost_estimate=cost,
    )(g_p, w_slab, b_slab)

    ae1 = out[:B, 0:n].astype(jnp.float32)
    ae2 = out[:B, PAD:PAD + n].astype(jnp.float32)
    ae2ae1 = out[:B, 2 * PAD:2 * PAD + n].astype(jnp.float32)
    return ae1, ae2, ae2ae1


def usad_forward(g, w_slab, b_slab):
    """Single-window forward matching the PyTorch module API: returns (n,) x3."""
    ae1, ae2, ae2ae1 = usad_forward_batched(g[None], w_slab, b_slab)
    return ae1.reshape(-1), ae2.reshape(-1), ae2ae1.reshape(-1)


# ---------------------------------------------------------------------------
# Pure-JAX references (batched) for correctness checks.
# cast_bf16=True mirrors the kernel's bf16-operand / f32-accumulate math;
# cast_bf16=False is the plain f32 semantic reference.
# ---------------------------------------------------------------------------
def usad_reference(g_batch, ws, bs, cast_bf16):
    def lin(x, i):
        w = ws[i]
        if cast_bf16:
            x = x.astype(jnp.bfloat16)
            w = w.astype(jnp.bfloat16)
        return jnp.dot(x, w, preferred_element_type=jnp.float32) + bs[i]

    def enc(x):
        h = jax.nn.relu(lin(x, 0))
        h = jax.nn.relu(lin(h, 1))
        return jax.nn.relu(lin(h, 2))

    def dec(x, base):
        h = jax.nn.relu(lin(x, base))
        h = jax.nn.relu(lin(h, base + 1))
        return jax.nn.sigmoid(lin(h, base + 2))

    g_flat = g_batch.reshape(g_batch.shape[0], -1).astype(jnp.float32)
    if cast_bf16:
        g_flat = g_flat.astype(jnp.bfloat16).astype(jnp.float32)
    z = enc(g_flat)
    ae1 = dec(z, 3)
    ae2 = dec(z, 6)
    ae2ae1 = dec(enc(ae1), 6)
    return ae1, ae2, ae2ae1


if __name__ == "__main__":
    feats = 4        # n_feats
    n_window = 10    # fixed by the module
    n = feats * n_window
    B = 40           # batch of windows -> adaptive tile 32, grid of 2 steps

    key = jax.random.PRNGKey(0)
    k_params, k_input = jax.random.split(key)
    (w_slab, b_slab), (ws, bs) = init_usad_params(k_params, feats, n_window)

    g_batch = jax.random.uniform(k_input, (B, n_window, feats), jnp.float32)

    ae1, ae2, ae2ae1 = usad_forward_batched(g_batch, w_slab, b_slab)
    jax.block_until_ready((ae1, ae2, ae2ae1))

    # Check vs. the bf16-operand reference (tolerance covers bf16 output
    # rounding) and loosely vs. the plain f32 reference (bf16 MXU rounding).
    ref_b = usad_reference(g_batch, ws, bs, cast_bf16=True)
    ref_f = usad_reference(g_batch, ws, bs, cast_bf16=False)
    for got, want_b, want_f in zip((ae1, ae2, ae2ae1), ref_b, ref_f):
        assert got.shape == (B, n)
        assert jnp.allclose(got, want_b, atol=6e-3, rtol=6e-3)
        assert jnp.allclose(got, want_f, atol=5e-2, rtol=5e-2)

    # Single-window (module-API) path: per-row math is tile-size independent.
    s1, s2, s3 = usad_forward(g_batch[0], w_slab, b_slab)
    jax.block_until_ready((s1, s2, s3))
    assert s1.shape == s2.shape == s3.shape == (n,)
    assert jnp.allclose(s1, ae1[0], atol=1e-5)
    assert jnp.allclose(s2, ae2[0], atol=1e-5)
    assert jnp.allclose(s3, ae2ae1[0], atol=1e-5)

    print("KERNEL_OK")
</pallas_src>

<mosaic_0001>
module attributes {stable_mosaic.version = 11 : i64} {
  func.func @usad_kernel(%arg0: i32, %arg1: memref<32x128xbf16, #tpu.memory_space<vmem>>, %arg2: memref<9x128x128xbf16, #tpu.memory_space<vmem>>, %arg3: memref<9x1x128xf32, #tpu.memory_space<vmem>>, %arg4: memref<32x384xbf16, #tpu.memory_space<vmem>>) attributes {dimension_semantics = [#tpu.dimension_semantics<parallel>], iteration_bounds = array<i64: 2>, scalar_prefetch = 0 : i64, scratch_operands = 0 : i64, tpu.core_type = #tpu.core_type<tc>, window_params = [{transform_indices = @transform_0, window_bounds = array<i64: 32, 128>}, {pipeline_mode = #tpu.pipeline_mode<synchronous>, transform_indices = @transform_1, window_bounds = array<i64: 9, 128, 128>}, {pipeline_mode = #tpu.pipeline_mode<synchronous>, transform_indices = @transform_2, window_bounds = array<i64: 9, 1, 128>}, {transform_indices = @transform_3, window_bounds = array<i64: 32, 384>}]} {
    %c0 = arith.constant 0 : index
    %c0_0 = arith.constant 0 : index
    %0 = vector.load %arg1[%c0, %c0_0] : memref<32x128xbf16, #tpu.memory_space<vmem>>, vector<32x128xbf16>
    %c0_1 = arith.constant 0 : index
    %c0_2 = arith.constant 0 : index
    %c0_3 = arith.constant 0 : index
    %1 = vector.load %arg2[%c0_1, %c0_2, %c0_3] : memref<9x128x128xbf16, #tpu.memory_space<vmem>>, vector<1x128x128xbf16>
    %2 = vector.shape_cast %1 : vector<1x128x128xbf16> to vector<128x128xbf16>
    %cst = arith.constant dense<0.000000e+00> : vector<32x128xf32>
    %3 = tpu.matmul %0, %2, %cst {dimension_numbers = #tpu.dot_dimension_numbers<[1], [0], [0], [1], [0, 0, 1, 1], [], []>} : vector<32x128xbf16>, vector<128x128xbf16>, vector<32x128xf32> -> vector<32x128xf32>
    %c0_4 = arith.constant 0 : index
    %c0_5 = arith.constant 0 : index
    %c0_6 = arith.constant 0 : index
    %4 = vector.load %arg3[%c0_4, %c0_5, %c0_6] : memref<9x1x128xf32, #tpu.memory_space<vmem>>, vector<1x1x128xf32>
    %5 = vector.shape_cast %4 : vector<1x1x128xf32> to vector<1x128xf32>
    %6 = vector.broadcast %5 : vector<1x128xf32> to vector<32x128xf32>
    %7 = arith.addf %3, %6 : vector<32x128xf32>
    %cst_7 = arith.constant 0.000000e+00 : f32
    %8 = vector.broadcast %cst_7 : f32 to vector<32x128xf32>
    %9 = arith.maximumf %7, %8 : vector<32x128xf32>
    %10 = arith.truncf %9 : vector<32x128xf32> to vector<32x128xbf16>
    %c1 = arith.constant 1 : index
    %c0_8 = arith.constant 0 : index
    %c0_9 = arith.constant 0 : index
    %11 = vector.load %arg2[%c1, %c0_8, %c0_9] : memref<9x128x128xbf16, #tpu.memory_space<vmem>>, vector<1x128x128xbf16>
    %12 = vector.shape_cast %11 : vector<1x128x128xbf16> to vector<128x128xbf16>
    %cst_10 = arith.constant dense<0.000000e+00> : vector<32x128xf32>
    %13 = tpu.matmul %10, %12, %cst_10 {dimension_numbers = #tpu.dot_dimension_numbers<[1], [0], [0], [1], [0, 0, 1, 1], [], []>} : vector<32x128xbf16>, vector<128x128xbf16>, vector<32x128xf32> -> vector<32x128xf32>
    %c1_11 = arith.constant 1 : index
    %c0_12 = arith.constant 0 : index
    %c0_13 = arith.constant 0 : index
    %14 = vector.load %arg3[%c1_11, %c0_12, %c0_13] : memref<9x1x128xf32, #tpu.memory_space<vmem>>, vector<1x1x128xf32>
    %15 = vector.shape_cast %14 : vector<1x1x128xf32> to vector<1x128xf32>
    %16 = vector.broadcast %15 : vector<1x128xf32> to vector<32x128xf32>
    %17 = arith.addf %13, %16 : vector<32x128xf32>
    %cst_14 = arith.constant 0.000000e+00 : f32
    %18 = vector.broadcast %cst_14 : f32 to vector<32x128xf32>
    %19 = arith.maximumf %17, %18 : vector<32x128xf32>
    %20 = arith.truncf %19 : vector<32x128xf32> to vector<32x128xbf16>
    %c2 = arith.constant 2 : index
    %c0_15 = arith.constant 0 : index
    %c0_16 = arith.constant 0 : index
    %21 = vector.load %arg2[%c2, %c0_15, %c0_16] : memref<9x128x128xbf16, #tpu.memory_space<vmem>>, vector<1x128x128xbf16>
    %22 = vector.shape_cast %21 : vector<1x128x128xbf16> to vector<128x128xbf16>
    %cst_17 = arith.constant dense<0.000000e+00> : vector<32x128xf32>
    %23 = tpu.matmul %20, %22, %cst_17 {dimension_numbers = #tpu.dot_dimension_numbers<[1], [0], [0], [1], [0, 0, 1, 1], [], []>} : vector<32x128xbf16>, vector<128x128xbf16>, vector<32x128xf32> -> vector<32x128xf32>
    %c2_18 = arith.constant 2 : index
    %c0_19 = arith.constant 0 : index
    %c0_20 = arith.constant 0 : index
    %24 = vector.load %arg3[%c2_18, %c0_19, %c0_20] : memref<9x1x128xf32, #tpu.memory_space<vmem>>, vector<1x1x128xf32>
    %25 = vector.shape_cast %24 : vector<1x1x128xf32> to vector<1x128xf32>
    %26 = vector.broadcast %25 : vector<1x128xf32> to vector<32x128xf32>
    %27 = arith.addf %23, %26 : vector<32x128xf32>
    %cst_21 = arith.constant 0.000000e+00 : f32
    %28 = vector.broadcast %cst_21 : f32 to vector<32x128xf32>
    %29 = arith.maximumf %27, %28 : vector<32x128xf32>
    %30 = arith.truncf %29 : vector<32x128xf32> to vector<32x128xbf16>
    %c3 = arith.constant 3 : index
    %c0_22 = arith.constant 0 : index
    %c0_23 = arith.constant 0 : index
    %31 = vector.load %arg2[%c3, %c0_22, %c0_23] : memref<9x128x128xbf16, #tpu.memory_space<vmem>>, vector<1x128x128xbf16>
    %32 = vector.shape_cast %31 : vector<1x128x128xbf16> to vector<128x128xbf16>
    %cst_24 = arith.constant dense<0.000000e+00> : vector<32x128xf32>
    %33 = tpu.matmul %30, %32, %cst_24 {dimension_numbers = #tpu.dot_dimension_numbers<[1], [0], [0], [1], [0, 0, 1, 1], [], []>} : vector<32x128xbf16>, vector<128x128xbf16>, vector<32x128xf32> -> vector<32x128xf32>
    %c3_25 = arith.constant 3 : index
    %c0_26 = arith.constant 0 : index
    %c0_27 = arith.constant 0 : index
    %34 = vector.load %arg3[%c3_25, %c0_26, %c0_27] : memref<9x1x128xf32, #tpu.memory_space<vmem>>, vector<1x1x128xf32>
    %35 = vector.shape_cast %34 : vector<1x1x128xf32> to vector<1x128xf32>
    %36 = vector.broadcast %35 : vector<1x128xf32> to vector<32x128xf32>
    %37 = arith.addf %33, %36 : vector<32x128xf32>
    %cst_28 = arith.constant 0.000000e+00 : f32
    %38 = vector.broadcast %cst_28 : f32 to vector<32x128xf32>
    %39 = arith.maximumf %37, %38 : vector<32x128xf32>
    %40 = arith.truncf %39 : vector<32x128xf32> to vector<32x128xbf16>
    %c4 = arith.constant 4 : index
    %c0_29 = arith.constant 0 : index
    %c0_30 = arith.constant 0 : index
    %41 = vector.load %arg2[%c4, %c0_29, %c0_30] : memref<9x128x128xbf16, #tpu.memory_space<vmem>>, vector<1x128x128xbf16>
    %42 = vector.shape_cast %41 : vector<1x128x128xbf16> to vector<128x128xbf16>
    %cst_31 = arith.constant dense<0.000000e+00> : vector<32x128xf32>
    %43 = tpu.matmul %40, %42, %cst_31 {dimension_numbers = #tpu.dot_dimension_numbers<[1], [0], [0], [1], [0, 0, 1, 1], [], []>} : vector<32x128xbf16>, vector<128x128xbf16>, vector<32x128xf32> -> vector<32x128xf32>
    %c4_32 = arith.constant 4 : index
    %c0_33 = arith.constant 0 : index
    %c0_34 = arith.constant 0 : index
    %44 = vector.load %arg3[%c4_32, %c0_33, %c0_34] : memref<9x1x128xf32, #tpu.memory_space<vmem>>, vector<1x1x128xf32>
    %45 = vector.shape_cast %44 : vector<1x1x128xf32> to vector<1x128xf32>
    %46 = vector.broadcast %45 : vector<1x128xf32> to vector<32x128xf32>
    %47 = arith.addf %43, %46 : vector<32x128xf32>
    %cst_35 = arith.constant 0.000000e+00 : f32
    %48 = vector.broadcast %cst_35 : f32 to vector<32x128xf32>
    %49 = arith.maximumf %47, %48 : vector<32x128xf32>
    %50 = arith.truncf %49 : vector<32x128xf32> to vector<32x128xbf16>
    %c5 = arith.constant 5 : index
    %c0_36 = arith.constant 0 : index
    %c0_37 = arith.constant 0 : index
    %51 = vector.load %arg2[%c5, %c0_36, %c0_37] : memref<9x128x128xbf16, #tpu.memory_space<vmem>>, vector<1x128x128xbf16>
    %52 = vector.shape_cast %51 : vector<1x128x128xbf16> to vector<128x128xbf16>
    %cst_38 = arith.constant dense<0.000000e+00> : vector<32x128xf32>
    %53 = tpu.matmul %50, %52, %cst_38 {dimension_numbers = #tpu.dot_dimension_numbers<[1], [0], [0], [1], [0, 0, 1, 1], [], []>} : vector<32x128xbf16>, vector<128x128xbf16>, vector<32x128xf32> -> vector<32x128xf32>
    %c5_39 = arith.constant 5 : index
    %c0_40 = arith.constant 0 : index
    %c0_41 = arith.constant 0 : index
    %54 = vector.load %arg3[%c5_39, %c0_40, %c0_41] : memref<9x1x128xf32, #tpu.memory_space<vmem>>, vector<1x1x128xf32>
    %55 = vector.shape_cast %54 : vector<1x1x128xf32> to vector<1x128xf32>
    %56 = vector.broadcast %55 : vector<1x128xf32> to vector<32x128xf32>
    %57 = arith.addf %53, %56 : vector<32x128xf32>
    %58 = arith.negf %57 : vector<32x128xf32>
    %59 = math.exp %58 : vector<32x128xf32>
    %cst_42 = arith.constant 1.000000e+00 : f32
    %60 = vector.broadcast %cst_42 : f32 to vector<32x128xf32>
    %61 = arith.addf %60, %59 : vector<32x128xf32>
    %62 = arith.divf %60, %61 : vector<32x128xf32>
    %63 = arith.truncf %62 : vector<32x128xf32> to vector<32x128xbf16>
    %c0_43 = arith.constant 0 : index
    %c0_44 = arith.constant 0 : index
    %c0_45 = arith.constant 0 : index
    %64 = vector.load %arg2[%c0_43, %c0_44, %c0_45] : memref<9x128x128xbf16, #tpu.memory_space<vmem>>, vector<1x128x128xbf16>
    %65 = vector.shape_cast %64 : vector<1x128x128xbf16> to vector<128x128xbf16>
    %cst_46 = arith.constant dense<0.000000e+00> : vector<32x128xf32>
    %66 = tpu.matmul %63, %65, %cst_46 {dimension_numbers = #tpu.dot_dimension_numbers<[1], [0], [0], [1], [0, 0, 1, 1], [], []>} : vector<32x128xbf16>, vector<128x128xbf16>, vector<32x128xf32> -> vector<32x128xf32>
    %c0_47 = arith.constant 0 : index
    %c0_48 = arith.constant 0 : index
    %c0_49 = arith.constant 0 : index
    %67 = vector.load %arg3[%c0_47, %c0_48, %c0_49] : memref<9x1x128xf32, #tpu.memory_space<vmem>>, vector<1x1x128xf32>
    %68 = vector.shape_cast %67 : vector<1x1x128xf32> to vector<1x128xf32>
    %69 = vector.broadcast %68 : vector<1x128xf32> to vector<32x128xf32>
    %70 = arith.addf %66, %69 : vector<32x128xf32>
    %cst_50 = arith.constant 0.000000e+00 : f32
    %71 = vector.broadcast %cst_50 : f32 to vector<32x128xf32>
    %72 = arith.maximumf %70, %71 : vector<32x128xf32>
    %73 = arith.truncf %72 : vector<32x128xf32> to vector<32x128xbf16>
    %c1_51 = arith.constant 1 : index
    %c0_52 = arith.constant 0 : index
    %c0_53 = arith.constant 0 : index
    %74 = vector.load %arg2[%c1_51, %c0_52, %c0_53] : memref<9x128x128xbf16, #tpu.memory_space<vmem>>, vector<1x128x128xbf16>
    %75 = vector.shape_cast %74 : vector<1x128x128xbf16> to vector<128x128xbf16>
    %cst_54 = arith.constant dense<0.000000e+00> : vector<32x128xf32>
    %76 = tpu.matmul %73, %75, %cst_54 {dimension_numbers = #tpu.dot_dimension_numbers<[1], [0], [0], [1], [0, 0, 1, 1], [], []>} : vector<32x128xbf16>, vector<128x128xbf16>, vector<32x128xf32> -> vector<32x128xf32>
    %c1_55 = arith.constant 1 : index
    %c0_56 = arith.constant 0 : index
    %c0_57 = arith.constant 0 : index
    %77 = vector.load %arg3[%c1_55, %c0_56, %c0_57] : memref<9x1x128xf32, #tpu.memory_space<vmem>>, vector<1x1x128xf32>
    %78 = vector.shape_cast %77 : vector<1x1x128xf32> to vector<1x128xf32>
    %79 = vector.broadcast %78 : vector<1x128xf32> to vector<32x128xf32>
    %80 = arith.addf %76, %79 : vector<32x128xf32>
    %cst_58 = arith.constant 0.000000e+00 : f32
    %81 = vector.broadcast %cst_58 : f32 to vector<32x128xf32>
    %82 = arith.maximumf %80, %81 : vector<32x128xf32>
    %83 = arith.truncf %82 : vector<32x128xf32> to vector<32x128xbf16>
    %c2_59 = arith.constant 2 : index
    %c0_60 = arith.constant 0 : index
    %c0_61 = arith.constant 0 : index
    %84 = vector.load %arg2[%c2_59, %c0_60, %c0_61] : memref<9x128x128xbf16, #tpu.memory_space<vmem>>, vector<1x128x128xbf16>
    %85 = vector.shape_cast %84 : vector<1x128x128xbf16> to vector<128x128xbf16>
    %cst_62 = arith.constant dense<0.000000e+00> : vector<32x128xf32>
    %86 = tpu.matmul %83, %85, %cst_62 {dimension_numbers = #tpu.dot_dimension_numbers<[1], [0], [0], [1], [0, 0, 1, 1], [], []>} : vector<32x128xbf16>, vector<128x128xbf16>, vector<32x128xf32> -> vector<32x128xf32>
    %c2_63 = arith.constant 2 : index
    %c0_64 = arith.constant 0 : index
    %c0_65 = arith.constant 0 : index
    %87 = vector.load %arg3[%c2_63, %c0_64, %c0_65] : memref<9x1x128xf32, #tpu.memory_space<vmem>>, vector<1x1x128xf32>
    %88 = vector.shape_cast %87 : vector<1x1x128xf32> to vector<1x128xf32>
    %89 = vector.broadcast %88 : vector<1x128xf32> to vector<32x128xf32>
    %90 = arith.addf %86, %89 : vector<32x128xf32>
    %cst_66 = arith.constant 0.000000e+00 : f32
    %91 = vector.broadcast %cst_66 : f32 to vector<32x128xf32>
    %92 = arith.maximumf %90, %91 : vector<32x128xf32>
    %93 = tpu.concatenate %29, %92 in 0 : vector<32x128xf32>, vector<32x128xf32> -> vector<64x128xf32>
    %94 = arith.truncf %93 : vector<64x128xf32> to vector<64x128xbf16>
    %c6 = arith.constant 6 : index
    %c0_67 = arith.constant 0 : index
    %c0_68 = arith.constant 0 : index
    %95 = vector.load %arg2[%c6, %c0_67, %c0_68] : memref<9x128x128xbf16, #tpu.memory_space<vmem>>, vector<1x128x128xbf16>
    %96 = vector.shape_cast %95 : vector<1x128x128xbf16> to vector<128x128xbf16>
    %cst_69 = arith.constant dense<0.000000e+00> : vector<64x128xf32>
    %97 = tpu.matmul %94, %96, %cst_69 {dimension_numbers = #tpu.dot_dimension_numbers<[1], [0], [0], [1], [0, 0, 1, 1], [], []>} : vector<64x128xbf16>, vector<128x128xbf16>, vector<64x128xf32> -> vector<64x128xf32>
    %c6_70 = arith.constant 6 : index
    %c0_71 = arith.constant 0 : index
    %c0_72 = arith.constant 0 : index
    %98 = vector.load %arg3[%c6_70, %c0_71, %c0_72] : memref<9x1x128xf32, #tpu.memory_space<vmem>>, vector<1x1x128xf32>
    %99 = vector.shape_cast %98 : vector<1x1x128xf32> to vector<1x128xf32>
    %100 = vector.broadcast %99 : vector<1x128xf32> to vector<64x128xf32>
    %101 = arith.addf %97, %100 : vector<64x128xf32>
    %cst_73 = arith.constant 0.000000e+00 : f32
    %102 = vector.broadcast %cst_73 : f32 to vector<64x128xf32>
    %103 = arith.maximumf %101, %102 : vector<64x128xf32>
    %104 = arith.truncf %103 : vector<64x128xf32> to vector<64x128xbf16>
    %c7 = arith.constant 7 : index
    %c0_74 = arith.constant 0 : index
    %c0_75 = arith.constant 0 : index
    %105 = vector.load %arg2[%c7, %c0_74, %c0_75] : memref<9x128x128xbf16, #tpu.memory_space<vmem>>, vector<1x128x128xbf16>
    %106 = vector.shape_cast %105 : vector<1x128x128xbf16> to vector<128x128xbf16>
    %cst_76 = arith.constant dense<0.000000e+00> : vector<64x128xf32>
    %107 = tpu.matmul %104, %106, %cst_76 {dimension_numbers = #tpu.dot_dimension_numbers<[1], [0], [0], [1], [0, 0, 1, 1], [], []>} : vector<64x128xbf16>, vector<128x128xbf16>, vector<64x128xf32> -> vector<64x128xf32>
    %c7_77 = arith.constant 7 : index
    %c0_78 = arith.constant 0 : index
    %c0_79 = arith.constant 0 : index
    %108 = vector.load %arg3[%c7_77, %c0_78, %c0_79] : memref<9x1x128xf32, #tpu.memory_space<vmem>>, vector<1x1x128xf32>
    %109 = vector.shape_cast %108 : vector<1x1x128xf32> to vector<1x128xf32>
    %110 = vector.broadcast %109 : vector<1x128xf32> to vector<64x128xf32>
    %111 = arith.addf %107, %110 : vector<64x128xf32>
    %cst_80 = arith.constant 0.000000e+00 : f32
    %112 = vector.broadcast %cst_80 : f32 to vector<64x128xf32>
    %113 = arith.maximumf %111, %112 : vector<64x128xf32>
    %114 = arith.truncf %113 : vector<64x128xf32> to vector<64x128xbf16>
    %c8 = arith.constant 8 : index
    %c0_81 = arith.constant 0 : index
    %c0_82 = arith.constant 0 : index
    %115 = vector.load %arg2[%c8, %c0_81, %c0_82] : memref<9x128x128xbf16, #tpu.memory_space<vmem>>, vector<1x128x128xbf16>
    %116 = vector.shape_cast %115 : vector<1x128x128xbf16> to vector<128x128xbf16>
    %cst_83 = arith.constant dense<0.000000e+00> : vector<64x128xf32>
    %117 = tpu.matmul %114, %116, %cst_83 {dimension_numbers = #tpu.dot_dimension_numbers<[1], [0], [0], [1], [0, 0, 1, 1], [], []>} : vector<64x128xbf16>, vector<128x128xbf16>, vector<64x128xf32> -> vector<64x128xf32>
    %c8_84 = arith.constant 8 : index
    %c0_85 = arith.constant 0 : index
    %c0_86 = arith.constant 0 : index
    %118 = vector.load %arg3[%c8_84, %c0_85, %c0_86] : memref<9x1x128xf32, #tpu.memory_space<vmem>>, vector<1x1x128xf32>
    %119 = vector.shape_cast %118 : vector<1x1x128xf32> to vector<1x128xf32>
    %120 = vector.broadcast %119 : vector<1x128xf32> to vector<64x128xf32>
    %121 = arith.addf %117, %120 : vector<64x128xf32>
    %122 = arith.negf %121 : vector<64x128xf32>
    %123 = math.exp %122 : vector<64x128xf32>
    %cst_87 = arith.constant 1.000000e+00 : f32
    %124 = vector.broadcast %cst_87 : f32 to vector<64x128xf32>
    %125 = arith.addf %124, %123 : vector<64x128xf32>
    %126 = arith.divf %124, %125 : vector<64x128xf32>
    %127 = vector.extract_strided_slice %126 {offsets = [0, 0], sizes = [32, 128], strides = [1, 1]} : vector<64x128xf32> to vector<32x128xf32>
    %128 = vector.extract_strided_slice %126 {offsets = [32, 0], sizes = [32, 128], strides = [1, 1]} : vector<64x128xf32> to vector<32x128xf32>
    %129 = arith.truncf %62 : vector<32x128xf32> to vector<32x128xbf16>
    %c0_88 = arith.constant 0 : index
    %c0_89 = arith.constant 0 : index
    %130 = vector.load %arg4[%c0_88, %c0_89] : memref<32x384xbf16, #tpu.memory_space<vmem>>, vector<32x128xbf16>
    tpu.vector_store %arg4[%c0_88, %c0_89], %129 {strides = array<i32>} : memref<32x384xbf16, #tpu.memory_space<vmem>>, vector<32x128xbf16>,
    %131 = arith.truncf %127 : vector<32x128xf32> to vector<32x128xbf16>
    %c0_90 = arith.constant 0 : index
    %c128 = arith.constant 128 : index
    %132 = vector.load %arg4[%c0_90, %c128] : memref<32x384xbf16, #tpu.memory_space<vmem>>, vector<32x128xbf16>
    tpu.vector_store %arg4[%c0_90, %c128], %131 {strides = array<i32>} : memref<32x384xbf16, #tpu.memory_space<vmem>>, vector<32x128xbf16>,
    %133 = arith.truncf %128 : vector<32x128xf32> to vector<32x128xbf16>
    %c0_91 = arith.constant 0 : index
    %c256 = arith.constant 256 : index
    %134 = vector.load %arg4[%c0_91, %c256] : memref<32x384xbf16, #tpu.memory_space<vmem>>, vector<32x128xbf16>
    tpu.vector_store %arg4[%c0_91, %c256], %133 {strides = array<i32>} : memref<32x384xbf16, #tpu.memory_space<vmem>>, vector<32x128xbf16>,
    return
  }
  func.func @transform_0(%arg0: i32) -> (i32, i32) {
    %c0_i32 = arith.constant 0 : i32
    %c0_i32_0 = arith.constant 0 : i32
    return %arg0, %c0_i32 : i32, i32
  }
  func.func @transform_1(%arg0: i32) -> (i32, i32, i32) {
    %c0_i32 = arith.constant 0 : i32
    %c0_i32_0 = arith.constant 0 : i32
    %c0_i32_1 = arith.constant 0 : i32
    %c0_i32_2 = arith.constant 0 : i32
    return %c0_i32, %c0_i32_0, %c0_i32_1 : i32, i32, i32
  }
  func.func @transform_2(%arg0: i32) -> (i32, i32, i32) {
    %c0_i32 = arith.constant 0 : i32
    %c0_i32_0 = arith.constant 0 : i32
    %c0_i32_1 = arith.constant 0 : i32
    %c0_i32_2 = arith.constant 0 : i32
    return %c0_i32, %c0_i32_0, %c0_i32_1 : i32, i32, i32
  }
  func.func @transform_3(%arg0: i32) -> (i32, i32) {
    %c0_i32 = arith.constant 0 : i32
    %c0_i32_0 = arith.constant 0 : i32
    return %arg0, %c0_i32 : i32, i32
  }
}

</mosaic_0001>

<llo_original>
// kernel: usad_forward_batched.1
$region0: #{usad_forward_batched.1}
  #allocation0 [shape = 'u32[]', space=smem, size = 0x4, offset = 0x4, fixed_abs, tag = 'smem constant byte address 0x4 - core index']
  #allocation1 [shape = 'u32[72,128]{1,0:T(1,128)}', space=vmem, size = 0x9000, scoped, tag = 'internal scratch']
  %s0 = inlined_call_operand.vmem [shape: bf16[64,128], index: 0, kind: input, shape index: {}]
  %s1 = inlined_call_operand.hbm [shape: bf16[9,128,128], index: 1, kind: input, shape index: {}]
  %s2 = inlined_call_operand.vmem [shape: f32[9,1,128], index: 2, kind: input, shape index: {}]
  %s3 = inlined_call_operand.vmem [shape: bf16[64,384], index: 3, kind: output, shape index: {}]
  %s4 = sld [smem:[#allocation0]]
  $region49: #{usad_forward_batched.1} parent=0
    _
  %s6 = ssub.s32 1, %s4
  %s7 = scalar_select 0, %s6, %s4
  $region1: #{usad_forward_batched.1} parent=0
    #allocation2 [shape = 'u8[294912]{0}', space=vmem, size = 0x48000, scoped, tag = 'input window, operand 1, single buffered']
    #allocation3 [shape = 's32[2]{0}', space=sflag, size = 0x8, scoped, tag = 'scoped memory for usad_forward_batched.1']
    %8 = vsyncpa [#allocation3], 0
    loop: start=0, step=1, limit=4
    $region2: #{usad_forward_batched.1} parent=1 // loop_pre_header
      _
    $region3: #{usad_forward_batched.1} parent=1 // loop_header
      %s10 = sphi 0, %s14
      %p11 = scmp.ge.s32.totalorder %s10, 4
      %s20 = sphi 0, %s22
      %s23 = sphi 0, %s20
      %s24 = sphi 0, %s23
      %s40 = sphi 0, %s24
      %s44 = sphi 0, %s44
      %s46 = sphi 0, %s44
      %s47 = sphi 0, %s46
      %s61 = sphi 0, %s47
      %s65 = sphi 0, %s65
      %s67 = sphi 0, %s65
      %s68 = sphi 0, %s67
      %s82 = sphi 0, %s68
      %s88 = sphi 0, %s90
      %s91 = sphi 0, %s88
      %s92 = sphi 0, %s91
      %s108 = sphi 0, %s92
    $region4: #{usad_forward_batched.1} parent=1 // loop_header_branch
      %13 = sbr.rel (%p11) target = $region8
    $region5: #{usad_forward_batched.1} parent=1 // loop_body
      %s15 = ssub.s32 %s10, 1
      %s16 = ssub.s32 %s10, 2
      %s17 = sadd.s32 %s10, 1
      %s18 = ssub.s32 %s10, %s17
      %p19 = scmp.eq.s32.totalorder %s18, 0
      %s21 = sadd.s32 %s20, 1
      %s22 = scalar_select %p19, %s20, %s21
      %p25 = pneg %p19
      %p26 = scmp.eq.s32.totalorder %s10, 1
      %p27 = por %p25, %p26
      %p28 = scmp.ne.s32.totalorder %s20, %s23
      %p29 = scmp.eq.s32.totalorder %s10, 0
      %p30 = por %p28, %p29
      %p31 = scmp.ne.s32.totalorder %s20, %s23
      %p32 = scmp.eq.s32.totalorder %s15, 1
      %p33 = por %p31, %p32
      %p34 = scmp.ne.s32.totalorder %s23, %s24
      %p35 = scmp.eq.s32.totalorder %s15, 0
      %p36 = por %p34, %p35
      %p37 = scmp.ne.s32.totalorder %s23, %s24
      %p38 = scmp.eq.s32.totalorder %s16, 1
      %p39 = por %p37, %p38
      %p41 = scmp.ne.s32.totalorder %s24, %s40
      %p42 = scmp.eq.s32.totalorder %s16, 0
      %p43 = por %p41, %p42
      %s45 = sadd.s32 %s44, 1
      %p48 = scmp.eq.s32.totalorder %s10, 1
      %p49 = scmp.ne.s32.totalorder %s44, %s46
      %p50 = scmp.eq.s32.totalorder %s10, 0
      %p51 = por %p49, %p50
      %p52 = scmp.ne.s32.totalorder %s44, %s46
      %p53 = scmp.eq.s32.totalorder %s15, 1
      %p54 = por %p52, %p53
      %p55 = scmp.ne.s32.totalorder %s46, %s47
      %p56 = scmp.eq.s32.totalorder %s15, 0
      %p57 = por %p55, %p56
      %p58 = scmp.ne.s32.totalorder %s46, %s47
      %p59 = scmp.eq.s32.totalorder %s16, 1
      %p60 = por %p58, %p59
      %p62 = scmp.ne.s32.totalorder %s47, %s61
      %p63 = scmp.eq.s32.totalorder %s16, 0
      %p64 = por %p62, %p63
      %s66 = sadd.s32 %s65, 1
      %p69 = scmp.eq.s32.totalorder %s10, 1
      %p70 = scmp.ne.s32.totalorder %s65, %s67
      %p71 = scmp.eq.s32.totalorder %s10, 0
      %p72 = por %p70, %p71
      %p73 = scmp.ne.s32.totalorder %s65, %s67
      %p74 = scmp.eq.s32.totalorder %s15, 1
      %p75 = por %p73, %p74
      %p76 = scmp.ne.s32.totalorder %s67, %s68
      %p77 = scmp.eq.s32.totalorder %s15, 0
      %p78 = por %p76, %p77
      %p79 = scmp.ne.s32.totalorder %s67, %s68
      %p80 = scmp.eq.s32.totalorder %s16, 1
      %p81 = por %p79, %p80
      %p83 = scmp.ne.s32.totalorder %s68, %s82
      %p84 = scmp.eq.s32.totalorder %s16, 0
      %p85 = por %p83, %p84
      %s86 = ssub.s32 %s10, %s17
      %p87 = scmp.eq.s32.totalorder %s86, 0
      %s89 = sadd.s32 %s88, 1
      %s90 = scalar_select %p87, %s88, %s89
      %p93 = pneg %p87
      %p94 = scmp.eq.s32.totalorder %s10, 1
      %p95 = por %p93, %p94
      %p96 = scmp.ne.s32.totalorder %s88, %s91
      %p97 = scmp.eq.s32.totalorder %s10, 0
      %p98 = por %p96, %p97
      %p99 = scmp.ne.s32.totalorder %s88, %s91
      %p100 = scmp.eq.s32.totalorder %s15, 1
      %p101 = por %p99, %p100
      %p102 = scmp.ne.s32.totalorder %s91, %s92
      %p103 = scmp.eq.s32.totalorder %s15, 0
      %p104 = por %p102, %p103
      %p105 = scmp.ne.s32.totalorder %s91, %s92
      %p106 = scmp.eq.s32.totalorder %s16, 1
      %p107 = por %p105, %p106
      %p109 = scmp.ne.s32.totalorder %s92, %s108
      %p110 = scmp.eq.s32.totalorder %s16, 0
      %p111 = por %p109, %p110
      %p112 = scmp.le.s32.totalorder 1, %s10
      %p113 = scmp.lt.s32.totalorder %s10, 3
      %p114 = pnand %p112, %p113
      %p115 = pneg %p114
      // Predicated region
      $region9: #{usad_forward_batched.1} parent=5 // pred_check
        _
      $region10: #{usad_forward_batched.1} parent=5 // pred_check_branch
        %117 = sbr.rel (%p114) target = $region12
      $region11: #{usad_forward_batched.1} parent=5 // pred_region
        %s118 = ssub.s32 %s10, 1
        // Predicated region
        $region13: #{usad_forward_batched.1} parent=11 // pred_check
          %p119 = pneg %p57
        $region14: #{usad_forward_batched.1} parent=11 // pred_check_branch
          %121 = sbr.rel (%p119) target = $region16
        $region15: #{usad_forward_batched.1} parent=11 // pred_region
          %123 = vsyncadd [#allocation3], 0
          %s124 = sshll.u32 %s1, 4
          %s125 = int_to_ptr.hbm [resolvable:$true] %s124
          %s126 = sshll.u32 [#allocation2], 4
          %s127 = int_to_ptr.vmem [resolvable:$true] %s126
          %132 = dma.hbm_to_vmem [thread:$0]  %s125, 9216, %s127, [#allocation3], 64, 64, 4
        $region16: #{usad_forward_batched.1} parent=11 // pred_fallthru
          _
        // Predicated region
        $region17: #{usad_forward_batched.1} parent=11 // pred_check
          %p133 = pneg %p78
        $region18: #{usad_forward_batched.1} parent=11 // pred_check_branch
          %135 = sbr.rel (%p133) target = $region20
        $region19: #{usad_forward_batched.1} parent=11 // pred_region
          _
        $region20: #{usad_forward_batched.1} parent=11 // pred_fallthru
          _
      $region12: #{usad_forward_batched.1} parent=5 // pred_fallthru
        _
      %p136 = scmp.lt.s32.totalorder %s10, 2
      // Predicated region
      $region21: #{usad_forward_batched.1} parent=5 // pred_check
        %p137 = pneg %p136
      $region22: #{usad_forward_batched.1} parent=5 // pred_check_branch
        %139 = sbr.rel (%p137) target = $region24
      $region23: #{usad_forward_batched.1} parent=5 // pred_region
        // Predicated region
        $region25: #{usad_forward_batched.1} parent=23 // pred_check
          %p140 = pneg %p30
        $region26: #{usad_forward_batched.1} parent=23 // pred_check_branch
          %142 = sbr.rel (%p140) target = $region28
        $region27: #{usad_forward_batched.1} parent=23 // pred_region
          %s143 = smul.u32 4, %s10
          %p144 = scmp.lt.s32.totalorder %s143, 7
          %s145 = scalar_select %p144, %s143, 7
          %s146 = smul.addr %s145, 4
          %s147 = scalar_lea.vmem %s0, %s146
          %s148 = smul.u32 4, %s10
        $region28: #{usad_forward_batched.1} parent=23 // pred_fallthru
          _
      $region24: #{usad_forward_batched.1} parent=5 // pred_fallthru
        _
      %p149 = scmp.le.s32.totalorder 1, %s10
      %p150 = scmp.lt.s32.totalorder %s10, 3
      %p151 = pnand %p149, %p150
      %p152 = pneg %p151
      // Predicated region
      $region29: #{usad_forward_batched.1} parent=5 // pred_check
        _
      $region30: #{usad_forward_batched.1} parent=5 // pred_check_branch
        %154 = sbr.rel (%p151) target = $region32
      $region31: #{usad_forward_batched.1} parent=5 // pred_region
        %s155 = ssub.s32 %s10, 1
        // Predicated region
        $region33: #{usad_forward_batched.1} parent=31 // pred_check
          %p156 = pneg %p57
        $region34: #{usad_forward_batched.1} parent=31 // pred_check_branch
          %158 = sbr.rel (%p156) target = $region36
        $region35: #{usad_forward_batched.1} parent=31 // pred_region
          %160 = dma.done [#allocation3], 9216
        $region36: #{usad_forward_batched.1} parent=31 // pred_fallthru
          _
        %s161 = smul.u32 4, %s15
        %p162 = scmp.lt.s32.totalorder %s161, 7
        %s163 = scalar_select %p162, %s161, 7
        %s164 = smul.addr %s163, 4
        %s165 = scalar_lea.vmem %s0, %s164
        %p166 = pneg %p36
        %p167 = pneg %p33
        %p168 = pneg %p57
        %p169 = pneg %p54
        %p170 = pneg %p78
        %p171 = pneg %p75
        %p172 = pneg %p104
        %p173 = pneg %p101
        %s174 = smul.u32 4, %s15
        %p175 = scmp.lt.s32.totalorder %s174, 7
        %s176 = scalar_select %p175, %s174, 7
        %s177 = smul.addr %s176, 3
        %s178 = smul.addr %s177, 4
        %s179 = scalar_lea.vmem %s3, %s178
        %s180 = smul.u32 4, %s15
        %p181 = scmp.lt.s32.totalorder %s180, 7
        %s182 = scalar_select %p181, %s180, 7
        %s183 = smul.addr %s182, 4
        %s184 = scalar_lea.vmem %s0, %s183
        %s185 = smul.u32 4, %s15
        %s186 = smul.u32 4, %s15
        %p187 = scmp.lt.s32.totalorder %s186, 7
        %s188 = scalar_select %p187, %s186, 7
        %s189 = smul.addr %s188, 3
        %s190 = smul.addr %s189, 4
        %s191 = scalar_lea.vmem %s3, %s190
        %s192 = smul.u32 4, %s15
        %v193 = vld [vmem:[%s184] sm:$0xf]
        %v194 = vld [vmem:[%s184 + $0x4] sm:$0xf]
        %v195 = vld [vmem:[%s184 + $0x8] sm:$0xf]
        %v196 = vld [vmem:[%s184 + $0xc] sm:$0xf]
        %v197 = vld [vmem:[#allocation2] sm:$0xf]
        %v198 = vld [vmem:[#allocation2 + $0x4] sm:$0xf]
        %v199 = vld [vmem:[#allocation2 + $0x8] sm:$0xf]
        %v200 = vld [vmem:[#allocation2 + $0xc] sm:$0xf]
        %v201 = vld [vmem:[#allocation2 + $0x10] sm:$0xf]
        %v202 = vld [vmem:[#allocation2 + $0x14] sm:$0xf]
        %v203 = vld [vmem:[#allocation2 + $0x18] sm:$0xf]
        %v204 = vld [vmem:[#allocation2 + $0x1c] sm:$0xf]
        %v205 = vld [vmem:[#allocation2 + $0x20] sm:$0xf]
        %v206 = vld [vmem:[#allocation2 + $0x24] sm:$0xf]
        %v207 = vld [vmem:[#allocation2 + $0x28] sm:$0xf]
        %v208 = vld [vmem:[#allocation2 + $0x2c] sm:$0xf]
        %v209 = vld [vmem:[#allocation2 + $0x30] sm:$0xf]
        %v210 = vld [vmem:[#allocation2 + $0x34] sm:$0xf]
        %v211 = vld [vmem:[#allocation2 + $0x38] sm:$0xf]
        %v212 = vld [vmem:[#allocation2 + $0x3c] sm:$0xf]
        %v213 = vld [vmem:[%s2] sm:$0x1]
        %v215 = vperm.slane %v213, 0
        %v221 = vunpack.c.l.b16 %v193
        %v222 = vunpack.c.l.b16 %v194
        %v223 = vunpack.c.l.b16 %v195
        %v224 = vunpack.c.l.b16 %v196
        %v225 = vpack.c.b16 %v222, %v221
        %v226 = vpack.c.b16 %v224, %v223
        %v245 = vunpack.c.l.b16 %v197
        %v246 = vunpack.c.l.b16 %v198
        %v247 = vunpack.c.l.b16 %v199
        %v248 = vunpack.c.l.b16 %v200
        %v249 = vunpack.c.l.b16 %v201
        %v250 = vunpack.c.l.b16 %v202
        %v251 = vunpack.c.l.b16 %v203
        %v252 = vunpack.c.l.b16 %v204
        %v253 = vunpack.c.l.b16 %v205
        %v254 = vunpack.c.l.b16 %v206
        %v255 = vunpack.c.l.b16 %v207
        %v256 = vunpack.c.l.b16 %v208
        %v257 = vunpack.c.l.b16 %v209
        %v258 = vunpack.c.l.b16 %v210
        %v259 = vunpack.c.l.b16 %v211
        %v260 = vunpack.c.l.b16 %v212
        %v261 = vpack.c.b16 %v246, %v245
        %v262 = vpack.c.b16 %v248, %v247
        %v263 = vpack.c.b16 %v250, %v249
        %v264 = vpack.c.b16 %v252, %v251
        %v265 = vpack.c.b16 %v254, %v253
        %v266 = vpack.c.b16 %v256, %v255
        %v267 = vpack.c.b16 %v258, %v257
        %v268 = vpack.c.b16 %v260, %v259
        %277 = vmatpush.bf16.msra.mxu0 %v268
        %278 = vmatpush.bf16.msra.mxu0 %v267
        %279 = vmatpush.bf16.msra.mxu0 %v266
        %280 = vmatpush.bf16.msra.mxu0 %v265
        %281 = vmatpush.bf16.msra.mxu0 %v264
        %282 = vmatpush.bf16.msra.mxu0 %v263
        %283 = vmatpush.bf16.msra.mxu0 %v262
        %284 = vmatpush.bf16.msra.mxu0 %v261
        %285 = vmatmul.bf16.gmra.mxu0 %v225
        %v286 = vpop.f32.mrf.mxu0
        %v287 = vadd.f32 %v215, %v286
        %v288 = vpop.f32.mrf.mxu0
        %v289 = vadd.f32 %v215, %v288
        %290 = vmatmul.bf16.gmra.mxu0 %v226
        %v291 = vpop.f32.mrf.mxu0
        %v292 = vadd.f32 %v215, %v291
        %v293 = vpop.f32.mrf.mxu0
        %v294 = vadd.f32 %v215, %v293
        %295 = vdwg.mxu0
        %v296 = vmax.f32 %v287, 0.0
        %v297 = vmax.f32 %v289, 0.0
        %v298 = vmax.f32 %v292, 0.0
        %v299 = vmax.f32 %v294, 0.0
        %v300 = vpack.c.bf16 %v297, %v296
        %v301 = vpack.c.bf16 %v299, %v298
        %s302 = scalar_lea.vmem [#allocation2], 64
        %v303 = vld [vmem:[%s302] sm:$0xf]
        %v304 = vld [vmem:[%s302 + $0x4] sm:$0xf]
        %v305 = vld [vmem:[%s302 + $0x8] sm:$0xf]
        %v306 = vld [vmem:[%s302 + $0xc] sm:$0xf]
        %v307 = vld [vmem:[%s302 + $0x10] sm:$0xf]
        %v308 = vld [vmem:[%s302 + $0x14] sm:$0xf]
        %v309 = vld [vmem:[%s302 + $0x18] sm:$0xf]
        %v310 = vld [vmem:[%s302 + $0x1c] sm:$0xf]
        %v311 = vld [vmem:[%s302 + $0x20] sm:$0xf]
        %v312 = vld [vmem:[%s302 + $0x24] sm:$0xf]
        %v313 = vld [vmem:[%s302 + $0x28] sm:$0xf]
        %v314 = vld [vmem:[%s302 + $0x2c] sm:$0xf]
        %v315 = vld [vmem:[%s302 + $0x30] sm:$0xf]
        %v316 = vld [vmem:[%s302 + $0x34] sm:$0xf]
        %v317 = vld [vmem:[%s302 + $0x38] sm:$0xf]
        %v318 = vld [vmem:[%s302 + $0x3c] sm:$0xf]
        %s319 = scalar_lea.vmem %s2, 1
        %v320 = vld [vmem:[%s319] sm:$0x1]
        %v322 = vperm.slane %v320, 0
        %v340 = vunpack.c.l.b16 %v303
        %v341 = vunpack.c.l.b16 %v304
        %v342 = vunpack.c.l.b16 %v305
        %v343 = vunpack.c.l.b16 %v306
        %v344 = vunpack.c.l.b16 %v307
        %v345 = vunpack.c.l.b16 %v308
        %v346 = vunpack.c.l.b16 %v309
        %v347 = vunpack.c.l.b16 %v310
        %v348 = vunpack.c.l.b16 %v311
        %v349 = vunpack.c.l.b16 %v312
        %v350 = vunpack.c.l.b16 %v313
        %v351 = vunpack.c.l.b16 %v314
        %v352 = vunpack.c.l.b16 %v315
        %v353 = vunpack.c.l.b16 %v316
        %v354 = vunpack.c.l.b16 %v317
        %v355 = vunpack.c.l.b16 %v318
        %v356 = vpack.c.b16 %v341, %v340
        %v357 = vpack.c.b16 %v343, %v342
        %v358 = vpack.c.b16 %v345, %v344
        %v359 = vpack.c.b16 %v347, %v346
        %v360 = vpack.c.b16 %v349, %v348
        %v361 = vpack.c.b16 %v351, %v350
        %v362 = vpack.c.b16 %v353, %v352
        %v363 = vpack.c.b16 %v355, %v354
        %372 = vmatpush.bf16.msra.mxu0 %v363
        %373 = vmatpush.bf16.msra.mxu0 %v362
        %374 = vmatpush.bf16.msra.mxu0 %v361
        %375 = vmatpush.bf16.msra.mxu0 %v360
        %376 = vmatpush.bf16.msra.mxu0 %v359
        %377 = vmatpush.bf16.msra.mxu0 %v358
        %378 = vmatpush.bf16.msra.mxu0 %v357
        %379 = vmatpush.bf16.msra.mxu0 %v356
        %380 = vmatmul.bf16.gmra.mxu0 %v300
        %v381 = vpop.f32.mrf.mxu0
        %v382 = vadd.f32 %v322, %v381
        %v383 = vpop.f32.mrf.mxu0
        %v384 = vadd.f32 %v322, %v383
        %385 = vmatmul.bf16.gmra.mxu0 %v301
        %v386 = vpop.f32.mrf.mxu0
        %v387 = vadd.f32 %v322, %v386
        %v388 = vpop.f32.mrf.mxu0
        %v389 = vadd.f32 %v322, %v388
        %390 = vdwg.mxu0
        %v391 = vmax.f32 %v382, 0.0
        %v392 = vmax.f32 %v384, 0.0
        %v393 = vmax.f32 %v387, 0.0
        %v394 = vmax.f32 %v389, 0.0
        %v395 = vpack.c.bf16 %v392, %v391
        %v396 = vpack.c.bf16 %v394, %v393
        %s397 = scalar_lea.vmem [#allocation2], 128
        %v398 = vld [vmem:[%s397] sm:$0xf]
        %v399 = vld [vmem:[%s397 + $0x4] sm:$0xf]
        %v400 = vld [vmem:[%s397 + $0x8] sm:$0xf]
        %v401 = vld [vmem:[%s397 + $0xc] sm:$0xf]
        %v402 = vld [vmem:[%s397 + $0x10] sm:$0xf]
        %v403 = vld [vmem:[%s397 + $0x14] sm:$0xf]
        %v404 = vld [vmem:[%s397 + $0x18] sm:$0xf]
        %v405 = vld [vmem:[%s397 + $0x1c] sm:$0xf]
        %v406 = vld [vmem:[%s397 + $0x20] sm:$0xf]
        %v407 = vld [vmem:[%s397 + $0x24] sm:$0xf]
        %v408 = vld [vmem:[%s397 + $0x28] sm:$0xf]
        %v409 = vld [vmem:[%s397 + $0x2c] sm:$0xf]
        %v410 = vld [vmem:[%s397 + $0x30] sm:$0xf]
        %v411 = vld [vmem:[%s397 + $0x34] sm:$0xf]
        %v412 = vld [vmem:[%s397 + $0x38] sm:$0xf]
        %v413 = vld [vmem:[%s397 + $0x3c] sm:$0xf]
        %s414 = scalar_lea.vmem %s2, 2
        %v415 = vld [vmem:[%s414] sm:$0x1]
        %v417 = vperm.slane %v415, 0
        %v435 = vunpack.c.l.b16 %v398
        %v436 = vunpack.c.l.b16 %v399
        %v437 = vunpack.c.l.b16 %v400
        %v438 = vunpack.c.l.b16 %v401
        %v439 = vunpack.c.l.b16 %v402
        %v440 = vunpack.c.l.b16 %v403
        %v441 = vunpack.c.l.b16 %v404
        %v442 = vunpack.c.l.b16 %v405
        %v443 = vunpack.c.l.b16 %v406
        %v444 = vunpack.c.l.b16 %v407
        %v445 = vunpack.c.l.b16 %v408
        %v446 = vunpack.c.l.b16 %v409
        %v447 = vunpack.c.l.b16 %v410
        %v448 = vunpack.c.l.b16 %v411
        %v449 = vunpack.c.l.b16 %v412
        %v450 = vunpack.c.l.b16 %v413
        %v451 = vpack.c.b16 %v436, %v435
        %v452 = vpack.c.b16 %v438, %v437
        %v453 = vpack.c.b16 %v440, %v439
        %v454 = vpack.c.b16 %v442, %v441
        %v455 = vpack.c.b16 %v444, %v443
        %v456 = vpack.c.b16 %v446, %v445
        %v457 = vpack.c.b16 %v448, %v447
        %v458 = vpack.c.b16 %v450, %v449
        %467 = vmatpush.bf16.msra.mxu0 %v458
        %468 = vmatpush.bf16.msra.mxu0 %v457
        %469 = vmatpush.bf16.msra.mxu0 %v456
        %470 = vmatpush.bf16.msra.mxu0 %v455
        %471 = vmatpush.bf16.msra.mxu0 %v454
        %472 = vmatpush.bf16.msra.mxu0 %v453
        %473 = vmatpush.bf16.msra.mxu0 %v452
        %474 = vmatpush.bf16.msra.mxu0 %v451
        %475 = vmatmul.bf16.gmra.mxu0 %v395
        %v476 = vpop.f32.mrf.mxu0
        %v477 = vadd.f32 %v417, %v476
        %v478 = vpop.f32.mrf.mxu0
        %v479 = vadd.f32 %v417, %v478
        %480 = vmatmul.bf16.gmra.mxu0 %v396
        %v481 = vpop.f32.mrf.mxu0
        %v482 = vadd.f32 %v417, %v481
        %v483 = vpop.f32.mrf.mxu0
        %v484 = vadd.f32 %v417, %v483
        %485 = vdwg.mxu0
        %v486 = vmax.f32 %v477, 0.0
        %v487 = vmax.f32 %v479, 0.0
        %v488 = vmax.f32 %v482, 0.0
        %v489 = vmax.f32 %v484, 0.0
        %v490 = vpack.c.bf16 %v487, %v486
        %v491 = vpack.c.bf16 %v489, %v488
        %s492 = scalar_lea.vmem [#allocation2], 192
        %v493 = vld [vmem:[%s492] sm:$0xf]
        %v494 = vld [vmem:[%s492 + $0x4] sm:$0xf]
        %v495 = vld [vmem:[%s492 + $0x8] sm:$0xf]
        %v496 = vld [vmem:[%s492 + $0xc] sm:$0xf]
        %v497 = vld [vmem:[%s492 + $0x10] sm:$0xf]
        %v498 = vld [vmem:[%s492 + $0x14] sm:$0xf]
        %v499 = vld [vmem:[%s492 + $0x18] sm:$0xf]
        %v500 = vld [vmem:[%s492 + $0x1c] sm:$0xf]
        %v501 = vld [vmem:[%s492 + $0x20] sm:$0xf]
        %v502 = vld [vmem:[%s492 + $0x24] sm:$0xf]
        %v503 = vld [vmem:[%s492 + $0x28] sm:$0xf]
        %v504 = vld [vmem:[%s492 + $0x2c] sm:$0xf]
        %v505 = vld [vmem:[%s492 + $0x30] sm:$0xf]
        %v506 = vld [vmem:[%s492 + $0x34] sm:$0xf]
        %v507 = vld [vmem:[%s492 + $0x38] sm:$0xf]
        %v508 = vld [vmem:[%s492 + $0x3c] sm:$0xf]
        %s509 = scalar_lea.vmem %s2, 3
        %v510 = vld [vmem:[%s509] sm:$0x1]
        %v512 = vperm.slane %v510, 0
        %v530 = vunpack.c.l.b16 %v493
        %v531 = vunpack.c.l.b16 %v494
        %v532 = vunpack.c.l.b16 %v495
        %v533 = vunpack.c.l.b16 %v496
        %v534 = vunpack.c.l.b16 %v497
        %v535 = vunpack.c.l.b16 %v498
        %v536 = vunpack.c.l.b16 %v499
        %v537 = vunpack.c.l.b16 %v500
        %v538 = vunpack.c.l.b16 %v501
        %v539 = vunpack.c.l.b16 %v502
        %v540 = vunpack.c.l.b16 %v503
        %v541 = vunpack.c.l.b16 %v504
        %v542 = vunpack.c.l.b16 %v505
        %v543 = vunpack.c.l.b16 %v506
        %v544 = vunpack.c.l.b16 %v507
        %v545 = vunpack.c.l.b16 %v508
        %v546 = vpack.c.b16 %v531, %v530
        %v547 = vpack.c.b16 %v533, %v532
        %v548 = vpack.c.b16 %v535, %v534
        %v549 = vpack.c.b16 %v537, %v536
        %v550 = vpack.c.b16 %v539, %v538
        %v551 = vpack.c.b16 %v541, %v540
        %v552 = vpack.c.b16 %v543, %v542
        %v553 = vpack.c.b16 %v545, %v544
        %562 = vmatpush.bf16.msra.mxu0 %v553
        %563 = vmatpush.bf16.msra.mxu0 %v552
        %564 = vmatpush.bf16.msra.mxu0 %v551
        %565 = vmatpush.bf16.msra.mxu0 %v550
        %566 = vmatpush.bf16.msra.mxu0 %v549
        %567 = vmatpush.bf16.msra.mxu0 %v548
        %568 = vmatpush.bf16.msra.mxu0 %v547
        %569 = vmatpush.bf16.msra.mxu0 %v546
        %570 = vmatmul.bf16.gmra.mxu0 %v490
        %v571 = vpop.f32.mrf.mxu0
        %v572 = vadd.f32 %v512, %v571
        %v573 = vpop.f32.mrf.mxu0
        %v574 = vadd.f32 %v512, %v573
        %575 = vmatmul.bf16.gmra.mxu0 %v491
        %v576 = vpop.f32.mrf.mxu0
        %v577 = vadd.f32 %v512, %v576
        %v578 = vpop.f32.mrf.mxu0
        %v579 = vadd.f32 %v512, %v578
        %580 = vdwg.mxu0
        %v581 = vmax.f32 %v572, 0.0
        %v582 = vmax.f32 %v574, 0.0
        %v583 = vmax.f32 %v577, 0.0
        %v584 = vmax.f32 %v579, 0.0
        %v585 = vpack.c.bf16 %v582, %v581
        %v586 = vpack.c.bf16 %v584, %v583
        %s587 = scalar_lea.vmem [#allocation2], 256
        %v588 = vld [vmem:[%s587] sm:$0xf]
        %v589 = vld [vmem:[%s587 + $0x4] sm:$0xf]
        %v590 = vld [vmem:[%s587 + $0x8] sm:$0xf]
        %v591 = vld [vmem:[%s587 + $0xc] sm:$0xf]
        %v592 = vld [vmem:[%s587 + $0x10] sm:$0xf]
        %v593 = vld [vmem:[%s587 + $0x14] sm:$0xf]
        %v594 = vld [vmem:[%s587 + $0x18] sm:$0xf]
        %v595 = vld [vmem:[%s587 + $0x1c] sm:$0xf]
        %v596 = vld [vmem:[%s587 + $0x20] sm:$0xf]
        %v597 = vld [vmem:[%s587 + $0x24] sm:$0xf]
        %v598 = vld [vmem:[%s587 + $0x28] sm:$0xf]
        %v599 = vld [vmem:[%s587 + $0x2c] sm:$0xf]
        %v600 = vld [vmem:[%s587 + $0x30] sm:$0xf]
        %v601 = vld [vmem:[%s587 + $0x34] sm:$0xf]
        %v602 = vld [vmem:[%s587 + $0x38] sm:$0xf]
        %v603 = vld [vmem:[%s587 + $0x3c] sm:$0xf]
        %s604 = scalar_lea.vmem %s2, 4
        %v605 = vld [vmem:[%s604] sm:$0x1]
        %v607 = vperm.slane %v605, 0
        %v625 = vunpack.c.l.b16 %v588
        %v626 = vunpack.c.l.b16 %v589
        %v627 = vunpack.c.l.b16 %v590
        %v628 = vunpack.c.l.b16 %v591
        %v629 = vunpack.c.l.b16 %v592
        %v630 = vunpack.c.l.b16 %v593
        %v631 = vunpack.c.l.b16 %v594
        %v632 = vunpack.c.l.b16 %v595
        %v633 = vunpack.c.l.b16 %v596
        %v634 = vunpack.c.l.b16 %v597
        %v635 = vunpack.c.l.b16 %v598
        %v636 = vunpack.c.l.b16 %v599
        %v637 = vunpack.c.l.b16 %v600
        %v638 = vunpack.c.l.b16 %v601
        %v639 = vunpack.c.l.b16 %v602
        %v640 = vunpack.c.l.b16 %v603
        %v641 = vpack.c.b16 %v626, %v625
        %v642 = vpack.c.b16 %v628, %v627
        %v643 = vpack.c.b16 %v630, %v629
        %v644 = vpack.c.b16 %v632, %v631
        %v645 = vpack.c.b16 %v634, %v633
        %v646 = vpack.c.b16 %v636, %v635
        %v647 = vpack.c.b16 %v638, %v637
        %v648 = vpack.c.b16 %v640, %v639
        %657 = vmatpush.bf16.msra.mxu0 %v648
        %658 = vmatpush.bf16.msra.mxu0 %v647
        %659 = vmatpush.bf16.msra.mxu0 %v646
        %660 = vmatpush.bf16.msra.mxu0 %v645
        %661 = vmatpush.bf16.msra.mxu0 %v644
        %662 = vmatpush.bf16.msra.mxu0 %v643
        %663 = vmatpush.bf16.msra.mxu0 %v642
        %664 = vmatpush.bf16.msra.mxu0 %v641
        %665 = vmatmul.bf16.gmra.mxu0 %v585
        %v666 = vpop.f32.mrf.mxu0
        %v667 = vadd.f32 %v607, %v666
        %v668 = vpop.f32.mrf.mxu0
        %v669 = vadd.f32 %v607, %v668
        %670 = vmatmul.bf16.gmra.mxu0 %v586
        %v671 = vpop.f32.mrf.mxu0
        %v672 = vadd.f32 %v607, %v671
        %v673 = vpop.f32.mrf.mxu0
        %v674 = vadd.f32 %v607, %v673
        %675 = vdwg.mxu0
        %v676 = vmax.f32 %v667, 0.0
        %v677 = vmax.f32 %v669, 0.0
        %v678 = vmax.f32 %v672, 0.0
        %v679 = vmax.f32 %v674, 0.0
        %v680 = vpack.c.bf16 %v677, %v676
        %v681 = vpack.c.bf16 %v679, %v678
        %s682 = scalar_lea.vmem [#allocation2], 320
        %v683 = vld [vmem:[%s682] sm:$0xf]
        %v684 = vld [vmem:[%s682 + $0x4] sm:$0xf]
        %v685 = vld [vmem:[%s682 + $0x8] sm:$0xf]
        %v686 = vld [vmem:[%s682 + $0xc] sm:$0xf]
        %v687 = vld [vmem:[%s682 + $0x10] sm:$0xf]
        %v688 = vld [vmem:[%s682 + $0x14] sm:$0xf]
        %v689 = vld [vmem:[%s682 + $0x18] sm:$0xf]
        %v690 = vld [vmem:[%s682 + $0x1c] sm:$0xf]
        %v691 = vld [vmem:[%s682 + $0x20] sm:$0xf]
        %v692 = vld [vmem:[%s682 + $0x24] sm:$0xf]
        %v693 = vld [vmem:[%s682 + $0x28] sm:$0xf]
        %v694 = vld [vmem:[%s682 + $0x2c] sm:$0xf]
        %v695 = vld [vmem:[%s682 + $0x30] sm:$0xf]
        %v696 = vld [vmem:[%s682 + $0x34] sm:$0xf]
        %v697 = vld [vmem:[%s682 + $0x38] sm:$0xf]
        %v698 = vld [vmem:[%s682 + $0x3c] sm:$0xf]
        %s699 = scalar_lea.vmem %s2, 5
        %v700 = vld [vmem:[%s699] sm:$0x1]
        %v702 = vperm.slane %v700, 0
        %v720 = vunpack.c.l.b16 %v683
        %v721 = vunpack.c.l.b16 %v684
        %v722 = vunpack.c.l.b16 %v685
        %v723 = vunpack.c.l.b16 %v686
        %v724 = vunpack.c.l.b16 %v687
        %v725 = vunpack.c.l.b16 %v688
        %v726 = vunpack.c.l.b16 %v689
        %v727 = vunpack.c.l.b16 %v690
        %v728 = vunpack.c.l.b16 %v691
        %v729 = vunpack.c.l.b16 %v692
        %v730 = vunpack.c.l.b16 %v693
        %v731 = vunpack.c.l.b16 %v694
        %v732 = vunpack.c.l.b16 %v695
        %v733 = vunpack.c.l.b16 %v696
        %v734 = vunpack.c.l.b16 %v697
        %v735 = vunpack.c.l.b16 %v698
        %v736 = vpack.c.b16 %v721, %v720
        %v737 = vpack.c.b16 %v723, %v722
        %v738 = vpack.c.b16 %v725, %v724
        %v739 = vpack.c.b16 %v727, %v726
        %v740 = vpack.c.b16 %v729, %v728
        %v741 = vpack.c.b16 %v731, %v730
        %v742 = vpack.c.b16 %v733, %v732
        %v743 = vpack.c.b16 %v735, %v734
        %752 = vmatpush.bf16.msra.mxu0 %v743
        %753 = vmatpush.bf16.msra.mxu0 %v742
        %754 = vmatpush.bf16.msra.mxu0 %v741
        %755 = vmatpush.bf16.msra.mxu0 %v740
        %756 = vmatpush.bf16.msra.mxu0 %v739
        %757 = vmatpush.bf16.msra.mxu0 %v738
        %758 = vmatpush.bf16.msra.mxu0 %v737
        %759 = vmatpush.bf16.msra.mxu0 %v736
        %760 = vmatmul.bf16.gmra.mxu0 %v680
        %v761 = vpop.f32.mrf.mxu0
        %v762 = vadd.f32 %v702, %v761
        %v763 = vpop.f32.mrf.mxu0
        %v764 = vadd.f32 %v702, %v763
        %765 = vmatmul.bf16.gmra.mxu0 %v681
        %v766 = vpop.f32.mrf.mxu0
        %v767 = vadd.f32 %v702, %v766
        %v768 = vpop.f32.mrf.mxu0
        %v769 = vadd.f32 %v702, %v768
        %770 = vdwg.mxu0
        %v771 = vxor.u32 %v762, 2147483648
        %v772 = vxor.u32 %v764, 2147483648
        %v773 = vxor.u32 %v767, 2147483648
        %v774 = vxor.u32 %v769, 2147483648
        %v775 = vmul.f32 %v771, 1.442695
        %v776 = vpow.pop %v775
        %v777 = vmul.f32 %v772, 1.442695
        %v778 = vpow.pop %v777
        %v779 = vmul.f32 %v773, 1.442695
        %v780 = vpow.pop %v779
        %v781 = vmul.f32 %v774, 1.442695
        %v782 = vpow.pop %v781
        %v783 = vadd.f32 %v776, 1.0
        %v784 = vadd.f32 %v778, 1.0
        %v785 = vadd.f32 %v780, 1.0
        %v786 = vadd.f32 %v782, 1.0
        %v787 = vrcp.pop %v783
        %v788 = vmul.f32 %v783, %v787
        %v789 = vsub.f32 1.0, %v788
        %v790 = vmul.f32 %v787, %v789
        %v791 = vadd.f32 %v787, %v790
        %vm792 = vweird.f32 %v783
        %vm793 = vweird.f32 %v787
        %vm794 = vmor %vm792, %vm793
        %v795 = vsel %vm794, %v787, %v791
        %v796 = vand.u32 2147483647, %v783
        %vm797 = vcmp.eq.f32.partialorder %v796, 8.507059e+37
        %v798 = vand.u32 %v783, 2147483648
        %v799 = vor.u32 1.1754944e-38, %v798
        %v800 = vsel %vm797, %v799, %v795
        %v801 = vmul.f32 1.0, %v800
        %v802 = vrcp.pop %v784
        %v803 = vmul.f32 %v784, %v802
        %v804 = vsub.f32 1.0, %v803
        %v805 = vmul.f32 %v802, %v804
        %v806 = vadd.f32 %v802, %v805
        %vm807 = vweird.f32 %v784
        %vm808 = vweird.f32 %v802
        %vm809 = vmor %vm807, %vm808
        %v810 = vsel %vm809, %v802, %v806
        %v811 = vand.u32 2147483647, %v784
        %vm812 = vcmp.eq.f32.partialorder %v811, 8.507059e+37
        %v813 = vand.u32 %v784, 2147483648
        %v814 = vor.u32 1.1754944e-38, %v813
        %v815 = vsel %vm812, %v814, %v810
        %v816 = vmul.f32 1.0, %v815
        %v817 = vrcp.pop %v785
        %v818 = vmul.f32 %v785, %v817
        %v819 = vsub.f32 1.0, %v818
        %v820 = vmul.f32 %v817, %v819
        %v821 = vadd.f32 %v817, %v820
        %vm822 = vweird.f32 %v785
        %vm823 = vweird.f32 %v817
        %vm824 = vmor %vm822, %vm823
        %v825 = vsel %vm824, %v817, %v821
        %v826 = vand.u32 2147483647, %v785
        %vm827 = vcmp.eq.f32.partialorder %v826, 8.507059e+37
        %v828 = vand.u32 %v785, 2147483648
        %v829 = vor.u32 1.1754944e-38, %v828
        %v830 = vsel %vm827, %v829, %v825
        %v831 = vmul.f32 1.0, %v830
        %v832 = vrcp.pop %v786
        %v833 = vmul.f32 %v786, %v832
        %v834 = vsub.f32 1.0, %v833
        %v835 = vmul.f32 %v832, %v834
        %v836 = vadd.f32 %v832, %v835
        %vm837 = vweird.f32 %v786
        %vm838 = vweird.f32 %v832
        %vm839 = vmor %vm837, %vm838
        %v840 = vsel %vm839, %v832, %v836
        %v841 = vand.u32 2147483647, %v786
        %vm842 = vcmp.eq.f32.partialorder %v841, 8.507059e+37
        %v843 = vand.u32 %v786, 2147483648
        %v844 = vor.u32 1.1754944e-38, %v843
        %v845 = vsel %vm842, %v844, %v840
        %v846 = vmul.f32 1.0, %v845
        %v847 = vpack.c.bf16 %v801, %v801
        %v848 = vpack.c.bf16 %v816, %v816
        %v849 = vpack.c.bf16 %v831, %v831
        %v850 = vpack.c.bf16 %v846, %v846
        %v855 = vunpack.c.l.b16 %v847
        %v856 = vunpack.c.l.b16 %v848
        %v857 = vunpack.c.l.b16 %v849
        %v858 = vunpack.c.l.b16 %v850
        %v859 = vpack.c.b16 %v856, %v855
        %v860 = vpack.c.b16 %v858, %v857
        %863 = vmatpush.bf16.msra.mxu0 %v268
        %864 = vmatpush.bf16.msra.mxu0 %v267
        %865 = vmatpush.bf16.msra.mxu0 %v266
        %866 = vmatpush.bf16.msra.mxu0 %v265
        %867 = vmatpush.bf16.msra.mxu0 %v264
        %868 = vmatpush.bf16.msra.mxu0 %v263
        %869 = vmatpush.bf16.msra.mxu0 %v262
        %870 = vmatpush.bf16.msra.mxu0 %v261
        %871 = vmatmul.bf16.gmra.mxu0 %v859
        %v872 = vpop.f32.mrf.mxu0
        %v873 = vadd.f32 %v215, %v872
        %v874 = vpop.f32.mrf.mxu0
        %v875 = vadd.f32 %v215, %v874
        %876 = vmatmul.bf16.gmra.mxu0 %v860
        %v877 = vpop.f32.mrf.mxu0
        %v878 = vadd.f32 %v215, %v877
        %v879 = vpop.f32.mrf.mxu0
        %v880 = vadd.f32 %v215, %v879
        %881 = vdwg.mxu0
        %v882 = vmax.f32 %v873, 0.0
        %v883 = vmax.f32 %v875, 0.0
        %v884 = vmax.f32 %v878, 0.0
        %v885 = vmax.f32 %v880, 0.0
        %v886 = vpack.c.bf16 %v883, %v882
        %v887 = vpack.c.bf16 %v885, %v884
        %888 = vmatpush.bf16.msra.mxu0 %v363
        %889 = vmatpush.bf16.msra.mxu0 %v362
        %890 = vmatpush.bf16.msra.mxu0 %v361
        %891 = vmatpush.bf16.msra.mxu0 %v360
        %892 = vmatpush.bf16.msra.mxu0 %v359
        %893 = vmatpush.bf16.msra.mxu0 %v358
        %894 = vmatpush.bf16.msra.mxu0 %v357
        %895 = vmatpush.bf16.msra.mxu0 %v356
        %896 = vmatmul.bf16.gmra.mxu0 %v886
        %v897 = vpop.f32.mrf.mxu0
        %v898 = vadd.f32 %v322, %v897
        %v899 = vpop.f32.mrf.mxu0
        %v900 = vadd.f32 %v322, %v899
        %901 = vmatmul.bf16.gmra.mxu0 %v887
        %v902 = vpop.f32.mrf.mxu0
        %v903 = vadd.f32 %v322, %v902
        %v904 = vpop.f32.mrf.mxu0
        %v905 = vadd.f32 %v322, %v904
        %906 = vdwg.mxu0
        %v907 = vmax.f32 %v898, 0.0
        %v908 = vmax.f32 %v900, 0.0
        %v909 = vmax.f32 %v903, 0.0
        %v910 = vmax.f32 %v905, 0.0
        %v911 = vpack.c.bf16 %v908, %v907
        %v912 = vpack.c.bf16 %v910, %v909
        %913 = vmatpush.bf16.msra.mxu0 %v458
        %914 = vmatpush.bf16.msra.mxu0 %v457
        %915 = vmatpush.bf16.msra.mxu0 %v456
        %916 = vmatpush.bf16.msra.mxu0 %v455
        %917 = vmatpush.bf16.msra.mxu0 %v454
        %918 = vmatpush.bf16.msra.mxu0 %v453
        %919 = vmatpush.bf16.msra.mxu0 %v452
        %920 = vmatpush.bf16.msra.mxu0 %v451
        %921 = vmatmul.bf16.gmra.mxu0 %v911
        %v922 = vpop.f32.mrf.mxu0
        %v923 = vadd.f32 %v417, %v922
        %v924 = vpop.f32.mrf.mxu0
        %v925 = vadd.f32 %v417, %v924
        %926 = vmatmul.bf16.gmra.mxu0 %v912
        %v927 = vpop.f32.mrf.mxu0
        %v928 = vadd.f32 %v417, %v927
        %v929 = vpop.f32.mrf.mxu0
        %v930 = vadd.f32 %v417, %v929
        %931 = vdwg.mxu0
        %v932 = vmax.f32 %v923, 0.0
        %v933 = vmax.f32 %v925, 0.0
        %v934 = vmax.f32 %v928, 0.0
        %v935 = vmax.f32 %v930, 0.0
        %v936 = vpack.c.bf16 %v933, %v932
        %v937 = vpack.c.bf16 %v935, %v934
        %s938 = scalar_lea.vmem [#allocation2], 384
        %v939 = vld [vmem:[%s938] sm:$0xf]
        %v940 = vld [vmem:[%s938 + $0x4] sm:$0xf]
        %v941 = vld [vmem:[%s938 + $0x8] sm:$0xf]
        %v942 = vld [vmem:[%s938 + $0xc] sm:$0xf]
        %v943 = vld [vmem:[%s938 + $0x10] sm:$0xf]
        %v944 = vld [vmem:[%s938 + $0x14] sm:$0xf]
        %v945 = vld [vmem:[%s938 + $0x18] sm:$0xf]
        %v946 = vld [vmem:[%s938 + $0x1c] sm:$0xf]
        %v947 = vld [vmem:[%s938 + $0x20] sm:$0xf]
        %v948 = vld [vmem:[%s938 + $0x24] sm:$0xf]
        %v949 = vld [vmem:[%s938 + $0x28] sm:$0xf]
        %v950 = vld [vmem:[%s938 + $0x2c] sm:$0xf]
        %v951 = vld [vmem:[%s938 + $0x30] sm:$0xf]
        %v952 = vld [vmem:[%s938 + $0x34] sm:$0xf]
        %v953 = vld [vmem:[%s938 + $0x38] sm:$0xf]
        %v954 = vld [vmem:[%s938 + $0x3c] sm:$0xf]
        %s955 = scalar_lea.vmem %s2, 6
        %v956 = vld [vmem:[%s955] sm:$0x1]
        %v958 = vperm.slane %v956, 0
        %v976 = vunpack.c.l.b16 %v939
        %v977 = vunpack.c.l.b16 %v940
        %v978 = vunpack.c.l.b16 %v941
        %v979 = vunpack.c.l.b16 %v942
        %v980 = vunpack.c.l.b16 %v943
        %v981 = vunpack.c.l.b16 %v944
        %v982 = vunpack.c.l.b16 %v945
        %v983 = vunpack.c.l.b16 %v946
        %v984 = vunpack.c.l.b16 %v947
        %v985 = vunpack.c.l.b16 %v948
        %v986 = vunpack.c.l.b16 %v949
        %v987 = vunpack.c.l.b16 %v950
        %v988 = vunpack.c.l.b16 %v951
        %v989 = vunpack.c.l.b16 %v952
        %v990 = vunpack.c.l.b16 %v953
        %v991 = vunpack.c.l.b16 %v954
        %v992 = vpack.c.b16 %v977, %v976
        %v993 = vpack.c.b16 %v979, %v978
        %v994 = vpack.c.b16 %v981, %v980
        %v995 = vpack.c.b16 %v983, %v982
        %v996 = vpack.c.b16 %v985, %v984
        %v997 = vpack.c.b16 %v987, %v986
        %v998 = vpack.c.b16 %v989, %v988
        %v999 = vpack.c.b16 %v991, %v990
        %1008 = vmatpush.bf16.msra.mxu0 %v999
        %1009 = vmatpush.bf16.msra.mxu0 %v998
        %1010 = vmatpush.bf16.msra.mxu0 %v997
        %1011 = vmatpush.bf16.msra.mxu0 %v996
        %1012 = vmatpush.bf16.msra.mxu0 %v995
        %1013 = vmatpush.bf16.msra.mxu0 %v994
        %1014 = vmatpush.bf16.msra.mxu0 %v993
        %1015 = vmatpush.bf16.msra.mxu0 %v992
        %1016 = vmatmul.bf16.gmra.mxu0 %v490
        %v1017 = vpop.f32.mrf.mxu0
        %v1018 = vadd.f32 %v958, %v1017
        %v1019 = vpop.f32.mrf.mxu0
        %v1020 = vadd.f32 %v958, %v1019
        %1021 = vmatmul.bf16.gmra.mxu0 %v491
        %v1022 = vpop.f32.mrf.mxu0
        %v1023 = vadd.f32 %v958, %v1022
        %v1024 = vpop.f32.mrf.mxu0
        %v1025 = vadd.f32 %v958, %v1024
        %1026 = vmatmul.bf16.gmra.mxu0 %v936
        %v1027 = vpop.f32.mrf.mxu0
        %v1028 = vadd.f32 %v958, %v1027
        %v1029 = vpop.f32.mrf.mxu0
        %v1030 = vadd.f32 %v958, %v1029
        %1031 = vmatmul.bf16.gmra.mxu0 %v937
        %v1032 = vpop.f32.mrf.mxu0
        %v1033 = vadd.f32 %v958, %v1032
        %v1034 = vpop.f32.mrf.mxu0
        %v1035 = vadd.f32 %v958, %v1034
        %1036 = vdwg.mxu0
        %v1037 = vmax.f32 %v1018, 0.0
        %v1038 = vmax.f32 %v1020, 0.0
        %v1039 = vmax.f32 %v1023, 0.0
        %v1040 = vmax.f32 %v1025, 0.0
        %v1041 = vmax.f32 %v1028, 0.0
        %v1042 = vmax.f32 %v1030, 0.0
        %v1043 = vmax.f32 %v1033, 0.0
        %v1044 = vmax.f32 %v1035, 0.0
        %v1045 = vpack.c.bf16 %v1038, %v1037
        %v1046 = vpack.c.bf16 %v1040, %v1039
        %v1047 = vpack.c.bf16 %v1042, %v1041
        %v1048 = vpack.c.bf16 %v1044, %v1043
        %s1049 = scalar_lea.vmem [#allocation2], 448
        %v1050 = vld [vmem:[%s1049] sm:$0xf]
        %v1051 = vld [vmem:[%s1049 + $0x4] sm:$0xf]
        %v1052 = vld [vmem:[%s1049 + $0x8] sm:$0xf]
        %v1053 = vld [vmem:[%s1049 + $0xc] sm:$0xf]
        %v1054 = vld [vmem:[%s1049 + $0x10] sm:$0xf]
        %v1055 = vld [vmem:[%s1049 + $0x14] sm:$0xf]
        %v1056 = vld [vmem:[%s1049 + $0x18] sm:$0xf]
        %v1057 = vld [vmem:[%s1049 + $0x1c] sm:$0xf]
        %v1058 = vld [vmem:[%s1049 + $0x20] sm:$0xf]
        %v1059 = vld [vmem:[%s1049 + $0x24] sm:$0xf]
        %v1060 = vld [vmem:[%s1049 + $0x28] sm:$0xf]
        %v1061 = vld [vmem:[%s1049 + $0x2c] sm:$0xf]
        %v1062 = vld [vmem:[%s1049 + $0x30] sm:$0xf]
        %v1063 = vld [vmem:[%s1049 + $0x34] sm:$0xf]
        %v1064 = vld [vmem:[%s1049 + $0x38] sm:$0xf]
        %v1065 = vld [vmem:[%s1049 + $0x3c] sm:$0xf]
        %s1066 = scalar_lea.vmem %s2, 7
        %v1067 = vld [vmem:[%s1066] sm:$0x1]
        %v1069 = vperm.slane %v1067, 0
        %v1087 = vunpack.c.l.b16 %v1050
        %v1088 = vunpack.c.l.b16 %v1051
        %v1089 = vunpack.c.l.b16 %v1052
        %v1090 = vunpack.c.l.b16 %v1053
        %v1091 = vunpack.c.l.b16 %v1054
        %v1092 = vunpack.c.l.b16 %v1055
        %v1093 = vunpack.c.l.b16 %v1056
        %v1094 = vunpack.c.l.b16 %v1057
        %v1095 = vunpack.c.l.b16 %v1058
        %v1096 = vunpack.c.l.b16 %v1059
        %v1097 = vunpack.c.l.b16 %v1060
        %v1098 = vunpack.c.l.b16 %v1061
        %v1099 = vunpack.c.l.b16 %v1062
        %v1100 = vunpack.c.l.b16 %v1063
        %v1101 = vunpack.c.l.b16 %v1064
        %v1102 = vunpack.c.l.b16 %v1065
        %v1103 = vpack.c.b16 %v1088, %v1087
        %v1104 = vpack.c.b16 %v1090, %v1089
        %v1105 = vpack.c.b16 %v1092, %v1091
        %v1106 = vpack.c.b16 %v1094, %v1093
        %v1107 = vpack.c.b16 %v1096, %v1095
        %v1108 = vpack.c.b16 %v1098, %v1097
        %v1109 = vpack.c.b16 %v1100, %v1099
        %v1110 = vpack.c.b16 %v1102, %v1101
        %1119 = vmatpush.bf16.msra.mxu0 %v1110
        %1120 = vmatpush.bf16.msra.mxu0 %v1109
        %1121 = vmatpush.bf16.msra.mxu0 %v1108
        %1122 = vmatpush.bf16.msra.mxu0 %v1107
        %1123 = vmatpush.bf16.msra.mxu0 %v1106
        %1124 = vmatpush.bf16.msra.mxu0 %v1105
        %1125 = vmatpush.bf16.msra.mxu0 %v1104
        %1126 = vmatpush.bf16.msra.mxu0 %v1103
        %1127 = vmatmul.bf16.gmra.mxu0 %v1045
        %v1128 = vpop.f32.mrf.mxu0
        %v1129 = vadd.f32 %v1069, %v1128
        %v1130 = vpop.f32.mrf.mxu0
        %v1131 = vadd.f32 %v1069, %v1130
        %1132 = vmatmul.bf16.gmra.mxu0 %v1046
        %v1133 = vpop.f32.mrf.mxu0
        %v1134 = vadd.f32 %v1069, %v1133
        %v1135 = vpop.f32.mrf.mxu0
        %v1136 = vadd.f32 %v1069, %v1135
        %1137 = vmatmul.bf16.gmra.mxu0 %v1047
        %v1138 = vpop.f32.mrf.mxu0
        %v1139 = vadd.f32 %v1069, %v1138
        %v1140 = vpop.f32.mrf.mxu0
        %v1141 = vadd.f32 %v1069, %v1140
        %1142 = vmatmul.bf16.gmra.mxu0 %v1048
        %v1143 = vpop.f32.mrf.mxu0
        %v1144 = vadd.f32 %v1069, %v1143
        %v1145 = vpop.f32.mrf.mxu0
        %v1146 = vadd.f32 %v1069, %v1145
        %1147 = vdwg.mxu0
        %v1148 = vmax.f32 %v1129, 0.0
        %v1149 = vmax.f32 %v1131, 0.0
        %v1150 = vmax.f32 %v1134, 0.0
        %v1151 = vmax.f32 %v1136, 0.0
        %v1152 = vmax.f32 %v1139, 0.0
        %v1153 = vmax.f32 %v1141, 0.0
        %v1154 = vmax.f32 %v1144, 0.0
        %v1155 = vmax.f32 %v1146, 0.0
        %v1156 = vpack.c.bf16 %v1149, %v1148
        %v1157 = vpack.c.bf16 %v1151, %v1150
        %v1158 = vpack.c.bf16 %v1153, %v1152
        %v1159 = vpack.c.bf16 %v1155, %v1154
        %s1160 = scalar_lea.vmem [#allocation2], 512
        %v1161 = vld [vmem:[%s1160] sm:$0xf]
        %v1162 = vld [vmem:[%s1160 + $0x4] sm:$0xf]
        %v1163 = vld [vmem:[%s1160 + $0x8] sm:$0xf]
        %v1164 = vld [vmem:[%s1160 + $0xc] sm:$0xf]
        %v1165 = vld [vmem:[%s1160 + $0x10] sm:$0xf]
        %v1166 = vld [vmem:[%s1160 + $0x14] sm:$0xf]
        %v1167 = vld [vmem:[%s1160 + $0x18] sm:$0xf]
        %v1168 = vld [vmem:[%s1160 + $0x1c] sm:$0xf]
        %v1169 = vld [vmem:[%s1160 + $0x20] sm:$0xf]
        %v1170 = vld [vmem:[%s1160 + $0x24] sm:$0xf]
        %v1171 = vld [vmem:[%s1160 + $0x28] sm:$0xf]
        %v1172 = vld [vmem:[%s1160 + $0x2c] sm:$0xf]
        %v1173 = vld [vmem:[%s1160 + $0x30] sm:$0xf]
        %v1174 = vld [vmem:[%s1160 + $0x34] sm:$0xf]
        %v1175 = vld [vmem:[%s1160 + $0x38] sm:$0xf]
        %v1176 = vld [vmem:[%s1160 + $0x3c] sm:$0xf]
        %s1177 = scalar_lea.vmem %s2, 8
        %v1178 = vld [vmem:[%s1177] sm:$0x1]
        %v1180 = vperm.slane %v1178, 0
        %v1198 = vunpack.c.l.b16 %v1161
        %v1199 = vunpack.c.l.b16 %v1162
        %v1200 = vunpack.c.l.b16 %v1163
        %v1201 = vunpack.c.l.b16 %v1164
        %v1202 = vunpack.c.l.b16 %v1165
        %v1203 = vunpack.c.l.b16 %v1166
        %v1204 = vunpack.c.l.b16 %v1167
        %v1205 = vunpack.c.l.b16 %v1168
        %v1206 = vunpack.c.l.b16 %v1169
        %v1207 = vunpack.c.l.b16 %v1170
        %v1208 = vunpack.c.l.b16 %v1171
        %v1209 = vunpack.c.l.b16 %v1172
        %v1210 = vunpack.c.l.b16 %v1173
        %v1211 = vunpack.c.l.b16 %v1174
        %v1212 = vunpack.c.l.b16 %v1175
        %v1213 = vunpack.c.l.b16 %v1176
        %v1214 = vpack.c.b16 %v1199, %v1198
        %v1215 = vpack.c.b16 %v1201, %v1200
        %v1216 = vpack.c.b16 %v1203, %v1202
        %v1217 = vpack.c.b16 %v1205, %v1204
        %v1218 = vpack.c.b16 %v1207, %v1206
        %v1219 = vpack.c.b16 %v1209, %v1208
        %v1220 = vpack.c.b16 %v1211, %v1210
        %v1221 = vpack.c.b16 %v1213, %v1212
        %1230 = vmatpush.bf16.msra.mxu0 %v1221
        %1231 = vmatpush.bf16.msra.mxu0 %v1220
        %1232 = vmatpush.bf16.msra.mxu0 %v1219
        %1233 = vmatpush.bf16.msra.mxu0 %v1218
        %1234 = vmatpush.bf16.msra.mxu0 %v1217
        %1235 = vmatpush.bf16.msra.mxu0 %v1216
        %1236 = vmatpush.bf16.msra.mxu0 %v1215
        %1237 = vmatpush.bf16.msra.mxu0 %v1214
        %1238 = vmatmul.bf16.gmra.mxu0 %v1156
        %v1239 = vpop.f32.mrf.mxu0
        %v1240 = vadd.f32 %v1180, %v1239
        %v1241 = vpop.f32.mrf.mxu0
        %v1242 = vadd.f32 %v1180, %v1241
        %1243 = vmatmul.bf16.gmra.mxu0 %v1157
        %v1244 = vpop.f32.mrf.mxu0
        %v1245 = vadd.f32 %v1180, %v1244
        %v1246 = vpop.f32.mrf.mxu0
        %v1247 = vadd.f32 %v1180, %v1246
        %1248 = vmatmul.bf16.gmra.mxu0 %v1158
        %v1249 = vpop.f32.mrf.mxu0
        %v1250 = vadd.f32 %v1180, %v1249
        %v1251 = vpop.f32.mrf.mxu0
        %v1252 = vadd.f32 %v1180, %v1251
        %1253 = vmatmul.bf16.gmra.mxu0 %v1159
        %v1254 = vpop.f32.mrf.mxu0
        %v1255 = vadd.f32 %v1180, %v1254
        %v1256 = vpop.f32.mrf.mxu0
        %v1257 = vadd.f32 %v1180, %v1256
        %1258 = vdwg.mxu0
        %v1259 = vxor.u32 %v1240, 2147483648
        %v1260 = vxor.u32 %v1242, 2147483648
        %v1261 = vxor.u32 %v1245, 2147483648
        %v1262 = vxor.u32 %v1247, 2147483648
        %v1263 = vxor.u32 %v1250, 2147483648
        %v1264 = vxor.u32 %v1252, 2147483648
        %v1265 = vxor.u32 %v1255, 2147483648
        %v1266 = vxor.u32 %v1257, 2147483648
        %v1267 = vmul.f32 %v1259, 1.442695
        %v1268 = vpow.pop %v1267
        %v1269 = vmul.f32 %v1260, 1.442695
        %v1270 = vpow.pop %v1269
        %v1271 = vmul.f32 %v1261, 1.442695
        %v1272 = vpow.pop %v1271
        %v1273 = vmul.f32 %v1262, 1.442695
        %v1274 = vpow.pop %v1273
        %v1275 = vmul.f32 %v1263, 1.442695
        %v1276 = vpow.pop %v1275
        %v1277 = vmul.f32 %v1264, 1.442695
        %v1278 = vpow.pop %v1277
        %v1279 = vmul.f32 %v1265, 1.442695
        %v1280 = vpow.pop %v1279
        %v1281 = vmul.f32 %v1266, 1.442695
        %v1282 = vpow.pop %v1281
        %v1283 = vadd.f32 %v1268, 1.0
        %v1284 = vadd.f32 %v1270, 1.0
        %v1285 = vadd.f32 %v1272, 1.0
        %v1286 = vadd.f32 %v1274, 1.0
        %v1287 = vadd.f32 %v1276, 1.0
        %v1288 = vadd.f32 %v1278, 1.0
        %v1289 = vadd.f32 %v1280, 1.0
        %v1290 = vadd.f32 %v1282, 1.0
        %v1291 = vrcp.pop %v1283
        %v1292 = vmul.f32 %v1283, %v1291
        %v1293 = vsub.f32 1.0, %v1292
        %v1294 = vmul.f32 %v1291, %v1293
        %v1295 = vadd.f32 %v1291, %v1294
        %vm1296 = vweird.f32 %v1283
        %vm1297 = vweird.f32 %v1291
        %vm1298 = vmor %vm1296, %vm1297
        %v1299 = vsel %vm1298, %v1291, %v1295
        %v1300 = vand.u32 2147483647, %v1283
        %vm1301 = vcmp.eq.f32.partialorder %v1300, 8.507059e+37
        %v1302 = vand.u32 %v1283, 2147483648
        %v1303 = vor.u32 1.1754944e-38, %v1302
        %v1304 = vsel %vm1301, %v1303, %v1299
        %v1305 = vmul.f32 1.0, %v1304
        %v1306 = vrcp.pop %v1284
        %v1307 = vmul.f32 %v1284, %v1306
        %v1308 = vsub.f32 1.0, %v1307
        %v1309 = vmul.f32 %v1306, %v1308
        %v1310 = vadd.f32 %v1306, %v1309
        %vm1311 = vweird.f32 %v1284
        %vm1312 = vweird.f32 %v1306
        %vm1313 = vmor %vm1311, %vm1312
        %v1314 = vsel %vm1313, %v1306, %v1310
        %v1315 = vand.u32 2147483647, %v1284
        %vm1316 = vcmp.eq.f32.partialorder %v1315, 8.507059e+37
        %v1317 = vand.u32 %v1284, 2147483648
        %v1318 = vor.u32 1.1754944e-38, %v1317
        %v1319 = vsel %vm1316, %v1318, %v1314
        %v1320 = vmul.f32 1.0, %v1319
        %v1321 = vrcp.pop %v1285
        %v1322 = vmul.f32 %v1285, %v1321
        %v1323 = vsub.f32 1.0, %v1322
        %v1324 = vmul.f32 %v1321, %v1323
        %v1325 = vadd.f32 %v1321, %v1324
        %vm1326 = vweird.f32 %v1285
        %vm1327 = vweird.f32 %v1321
        %vm1328 = vmor %vm1326, %vm1327
        %v1329 = vsel %vm1328, %v1321, %v1325
        %v1330 = vand.u32 2147483647, %v1285
        %vm1331 = vcmp.eq.f32.partialorder %v1330, 8.507059e+37
        %v1332 = vand.u32 %v1285, 2147483648
        %v1333 = vor.u32 1.1754944e-38, %v1332
        %v1334 = vsel %vm1331, %v1333, %v1329
        %v1335 = vmul.f32 1.0, %v1334
        %v1336 = vrcp.pop %v1286
        %v1337 = vmul.f32 %v1286, %v1336
        %v1338 = vsub.f32 1.0, %v1337
        %v1339 = vmul.f32 %v1336, %v1338
        %v1340 = vadd.f32 %v1336, %v1339
        %vm1341 = vweird.f32 %v1286
        %vm1342 = vweird.f32 %v1336
        %vm1343 = vmor %vm1341, %vm1342
        %v1344 = vsel %vm1343, %v1336, %v1340
        %v1345 = vand.u32 2147483647, %v1286
        %vm1346 = vcmp.eq.f32.partialorder %v1345, 8.507059e+37
        %v1347 = vand.u32 %v1286, 2147483648
        %v1348 = vor.u32 1.1754944e-38, %v1347
        %v1349 = vsel %vm1346, %v1348, %v1344
        %v1350 = vmul.f32 1.0, %v1349
        %v1351 = vrcp.pop %v1287
        %v1352 = vmul.f32 %v1287, %v1351
        %v1353 = vsub.f32 1.0, %v1352
        %v1354 = vmul.f32 %v1351, %v1353
        %v1355 = vadd.f32 %v1351, %v1354
        %vm1356 = vweird.f32 %v1287
        %vm1357 = vweird.f32 %v1351
        %vm1358 = vmor %vm1356, %vm1357
        %v1359 = vsel %vm1358, %v1351, %v1355
        %v1360 = vand.u32 2147483647, %v1287
        %vm1361 = vcmp.eq.f32.partialorder %v1360, 8.507059e+37
        %v1362 = vand.u32 %v1287, 2147483648
        %v1363 = vor.u32 1.1754944e-38, %v1362
        %v1364 = vsel %vm1361, %v1363, %v1359
        %v1365 = vmul.f32 1.0, %v1364
        %v1366 = vrcp.pop %v1288
        %v1367 = vmul.f32 %v1288, %v1366
        %v1368 = vsub.f32 1.0, %v1367
        %v1369 = vmul.f32 %v1366, %v1368
        %v1370 = vadd.f32 %v1366, %v1369
        %vm1371 = vweird.f32 %v1288
        %vm1372 = vweird.f32 %v1366
        %vm1373 = vmor %vm1371, %vm1372
        %v1374 = vsel %vm1373, %v1366, %v1370
        %v1375 = vand.u32 2147483647, %v1288
        %vm1376 = vcmp.eq.f32.partialorder %v1375, 8.507059e+37
        %v1377 = vand.u32 %v1288, 2147483648
        %v1378 = vor.u32 1.1754944e-38, %v1377
        %v1379 = vsel %vm1376, %v1378, %v1374
        %v1380 = vmul.f32 1.0, %v1379
        %v1381 = vrcp.pop %v1289
        %v1382 = vmul.f32 %v1289, %v1381
        %v1383 = vsub.f32 1.0, %v1382
        %v1384 = vmul.f32 %v1381, %v1383
        %v1385 = vadd.f32 %v1381, %v1384
        %vm1386 = vweird.f32 %v1289
        %vm1387 = vweird.f32 %v1381
        %vm1388 = vmor %vm1386, %vm1387
        %v1389 = vsel %vm1388, %v1381, %v1385
        %v1390 = vand.u32 2147483647, %v1289
        %vm1391 = vcmp.eq.f32.partialorder %v1390, 8.507059e+37
        %v1392 = vand.u32 %v1289, 2147483648
        %v1393 = vor.u32 1.1754944e-38, %v1392
        %v1394 = vsel %vm1391, %v1393, %v1389
        %v1395 = vmul.f32 1.0, %v1394
        %v1396 = vrcp.pop %v1290
        %v1397 = vmul.f32 %v1290, %v1396
        %v1398 = vsub.f32 1.0, %v1397
        %v1399 = vmul.f32 %v1396, %v1398
        %v1400 = vadd.f32 %v1396, %v1399
        %vm1401 = vweird.f32 %v1290
        %vm1402 = vweird.f32 %v1396
        %vm1403 = vmor %vm1401, %vm1402
        %v1404 = vsel %vm1403, %v1396, %v1400
        %v1405 = vand.u32 2147483647, %v1290
        %vm1406 = vcmp.eq.f32.partialorder %v1405, 8.507059e+37
        %v1407 = vand.u32 %v1290, 2147483648
        %v1408 = vor.u32 1.1754944e-38, %v1407
        %v1409 = vsel %vm1406, %v1408, %v1404
        %v1410 = vmul.f32 1.0, %v1409
        %1411 = vst [vmem:[%s191] sm:$0xf] %v847
        %1412 = vst [vmem:[%s191 + $0xc] sm:$0xf] %v848
        %1413 = vst [vmem:[%s191 + $0x18] sm:$0xf] %v849
        %1414 = vst [vmem:[%s191 + $0x24] sm:$0xf] %v850
        %v1415 = vpack.c.bf16 %v1305, %v1305
        %v1416 = vpack.c.bf16 %v1320, %v1320
        %v1417 = vpack.c.bf16 %v1335, %v1335
        %v1418 = vpack.c.bf16 %v1350, %v1350
        %1419 = vst [vmem:[%s191 + $0x4] sm:$0xf] %v1415
        %1420 = vst [vmem:[%s191 + $0x10] sm:$0xf] %v1416
        %1421 = vst [vmem:[%s191 + $0x1c] sm:$0xf] %v1417
        %1422 = vst [vmem:[%s191 + $0x28] sm:$0xf] %v1418
        %v1423 = vpack.c.bf16 %v1365, %v1365
        %v1424 = vpack.c.bf16 %v1380, %v1380
        %v1425 = vpack.c.bf16 %v1395, %v1395
        %v1426 = vpack.c.bf16 %v1410, %v1410
        %1427 = vst [vmem:[%s191 + $0x8] sm:$0xf] %v1423
        %1428 = vst [vmem:[%s191 + $0x14] sm:$0xf] %v1424
        %1429 = vst [vmem:[%s191 + $0x20] sm:$0xf] %v1425
        %1430 = vst [vmem:[%s191 + $0x2c] sm:$0xf] %v1426
        %s1431 = smul.u32 4, %s15
        %p1432 = scmp.lt.s32.totalorder %s1431, 7
        %s1433 = scalar_select %p1432, %s1431, 7
        %s1434 = smul.addr %s1433, 3
        %s1435 = smul.addr %s1434, 4
        %s1436 = scalar_lea.vmem %s3, %s1435
        // Predicated region
        $region37: #{usad_forward_batched.1} parent=31 // pred_check
          %p1437 = pneg %p101
        $region38: #{usad_forward_batched.1} parent=31 // pred_check_branch
          %1439 = sbr.rel (%p1437) target = $region40
        $region39: #{usad_forward_batched.1} parent=31 // pred_region
          %s1440 = smul.u32 4, %s15
        $region40: #{usad_forward_batched.1} parent=31 // pred_fallthru
          _
      $region32: #{usad_forward_batched.1} parent=5 // pred_fallthru
        _
      %p1441 = scmp.le.s32.totalorder 2, %s10
      // Predicated region
      $region41: #{usad_forward_batched.1} parent=5 // pred_check
        %p1442 = pneg %p1441
      $region42: #{usad_forward_batched.1} parent=5 // pred_check_branch
        %1444 = sbr.rel (%p1442) target = $region44
      $region43: #{usad_forward_batched.1} parent=5 // pred_region
        %s1445 = ssub.s32 %s10, 2
        // Predicated region
        $region45: #{usad_forward_batched.1} parent=43 // pred_check
          %p1446 = pneg %p107
        $region46: #{usad_forward_batched.1} parent=43 // pred_check_branch
          %1448 = sbr.rel (%p1446) target = $region48
        $region47: #{usad_forward_batched.1} parent=43 // pred_region
          %s1449 = smul.u32 4, %s16
          %p1450 = scmp.lt.s32.totalorder %s1449, 7
          %s1451 = scalar_select %p1450, %s1449, 7
          %s1452 = smul.addr %s1451, 3
          %s1453 = smul.addr %s1452, 4
          %s1454 = scalar_lea.vmem %s3, %s1453
        $region48: #{usad_forward_batched.1} parent=43 // pred_fallthru
          _
      $region44: #{usad_forward_batched.1} parent=5 // pred_fallthru
        _
    $region6: #{usad_forward_batched.1} parent=1 // loop_footer
      %s14 = sadd.s32 1, %s10
    $region7: #{usad_forward_batched.1} parent=1 // loop_footer_branch
      %9 = sbr.rel target = $region3
    $region8: #{usad_forward_batched.1} parent=1 // loop_exit
      _
    %1455 = vsyncpa [#allocation3], 1
    %s1456 = scalar_lea.sflag [#allocation3], 1
    %1457 = vsyncpa %s1456, 1

</llo_original>
